<compile_context>
chip_gen: v7x
topology: tpu7x:2x2x1
jax: 0.10.0
libtpu: 0.0.40
codegen_flags: <defaults>
</compile_context>

<pallas_src>
import functools

import jax
import jax.numpy as jnp
from jax.experimental import pallas as pl
from jax.experimental.pallas import tpu as pltpu


_LANES = 512        # lane width: multiple of 128 -> unmasked, lane-dense stores
_BLOCK_ROWS = 256   # sublane block: multiple of 8; 256*512*4B = 512 KiB per block
_PALLAS_MIN_N = 1024  # below this, plain XLA elementwise is strictly faster


def _modulo_kernel(keys_ref, keys_out_ref, *, modulo: int):
    k = keys_ref[...]
    if modulo & (modulo - 1) == 0:
        # Power-of-two modulo: bitwise AND, already non-negative (two's
        # complement AND matches Python-remainder semantics for negatives).
        keys_out_ref[...] = jnp.bitwise_and(k, jnp.int32(modulo - 1))
    else:
        # General case: Python-style remainder (sign of divisor), VPU work.
        keys_out_ref[...] = jnp.remainder(k, jnp.int32(modulo))


def modulo_map_id_score_list(raw_keys: jax.Array, raw_values: jax.Array, modulo: int):
    """JAX/Pallas equivalent of ModuloMapIDScoreList.forward.

    raw_keys:   int[N]   (torch would use int64; int32 here)
    raw_values: float[N]
    returns:    (int32[N] keys mod `modulo`, raw_values passthrough)
    """
    if modulo <= 0:
        raise ValueError(f"modulo must be a positive integer, got {modulo}")
    assert raw_keys.shape == raw_values.shape and raw_keys.ndim == 1
    n = raw_keys.shape[0]

    keys32 = raw_keys.astype(jnp.int32)

    # Small id-score lists: skip Pallas, a fused XLA elementwise op wins.
    if n < _PALLAS_MIN_N:
        return jnp.remainder(keys32, jnp.int32(modulo)), raw_values

    # Pad to a multiple of the lane width and view as a dense (rows, 512) slab.
    padded_n = pl.cdiv(n, _LANES) * _LANES
    if padded_n != n:
        keys32 = jnp.pad(keys32, (0, padded_n - n))
    rows = padded_n // _LANES
    keys2d = keys32.reshape(rows, _LANES)

    # Block shape: full row-extent for small slabs, otherwise 256-row tiles
    # (multiple of 8 sublanes). Ragged last block is handled by Pallas; the
    # padded tail is sliced off below.
    block_rows = rows if rows <= _BLOCK_ROWS else _BLOCK_ROWS
    grid = (pl.cdiv(rows, block_rows),)

    kernel = functools.partial(_modulo_kernel, modulo=modulo)

    out2d = pl.pallas_call(
        kernel,
        out_shape=jax.ShapeDtypeStruct((rows, _LANES), jnp.int32),
        grid=grid,
        in_specs=[pl.BlockSpec((block_rows, _LANES), lambda i: (i, 0))],
        out_specs=pl.BlockSpec((block_rows, _LANES), lambda i: (i, 0)),
        compiler_params=pltpu.CompilerParams(
            dimension_semantics=("parallel",),
        ),
    )(keys2d)

    out_keys = out2d.reshape(padded_n)[:n]
    # Values are a pure passthrough: no kernel work, no extra HBM traffic.
    return out_keys, raw_values


if __name__ == "__main__":
    key = jax.random.PRNGKey(0)
    k_small, k_large, k_vals_small, k_vals_large = jax.random.split(key, 4)

    # --- Case 1: tiny id-score list (N=8), fast plain-JAX path -------------
    MODULO_SMALL = 7
    N_SMALL = 8
    keys_small = jax.random.randint(
        k_small, (N_SMALL,), minval=-50, maxval=50, dtype=jnp.int32)
    vals_small = jax.random.uniform(k_vals_small, (N_SMALL,), dtype=jnp.float32)
    ok_small, ov_small = modulo_map_id_score_list(keys_small, vals_small, MODULO_SMALL)
    jax.block_until_ready((ok_small, ov_small))
    ref_small = jnp.remainder(keys_small, MODULO_SMALL)
    assert jnp.array_equal(ok_small, ref_small)
    assert jnp.array_equal(ov_small, vals_small)

    # --- Case 2: larger list, Pallas path, non-power-of-two modulo ---------
    # N chosen so the padded slab spans multiple row-blocks (grid > 1) and the
    # last block is ragged, exercising padding + pipelined grid.
    MODULO = 1000
    N = 150_000
    raw_keys = jax.random.randint(
        k_large, (N,), minval=-1_000_000, maxval=1_000_000, dtype=jnp.int32)
    raw_values = jax.random.uniform(k_vals_large, (N,), dtype=jnp.float32)

    out_keys, out_values = modulo_map_id_score_list(raw_keys, raw_values, MODULO)
    jax.block_until_ready((out_keys, out_values))

    ref_keys = jnp.remainder(raw_keys, MODULO)
    assert jnp.array_equal(out_keys, ref_keys)
    assert jnp.array_equal(out_values, raw_values)
    assert bool(jnp.all(out_keys >= 0)) and bool(jnp.all(out_keys < MODULO))

    # --- Case 3: power-of-two modulo exercises the bitwise-AND kernel ------
    MODULO_POW2 = 16
    out_keys2, out_values2 = modulo_map_id_score_list(raw_keys, raw_values, MODULO_POW2)
    jax.block_until_ready((out_keys2, out_values2))
    ref_keys2 = jnp.remainder(raw_keys, MODULO_POW2)
    assert jnp.array_equal(out_keys2, ref_keys2)
    assert jnp.array_equal(out_values2, raw_values)

    print("KERNEL_OK")
</pallas_src>

<mosaic_0001>
module attributes {stable_mosaic.version = 11 : i64} {
  func.func @_modulo_kernel(%arg0: i32, %arg1: memref<256x512xi32, #tpu.memory_space<vmem>>, %arg2: memref<256x512xi32, #tpu.memory_space<vmem>>) attributes {dimension_semantics = [#tpu.dimension_semantics<parallel>], iteration_bounds = array<i64: 2>, scalar_prefetch = 0 : i64, scratch_operands = 0 : i64, tpu.core_type = #tpu.core_type<tc>, window_params = [{transform_indices = @transform_0, window_bounds = array<i64: 256, 512>}, {transform_indices = @transform_1, window_bounds = array<i64: 256, 512>}]} {
    %c0 = arith.constant 0 : index
    %c0_0 = arith.constant 0 : index
    %0 = vector.load %arg1[%c0, %c0_0] : memref<256x512xi32, #tpu.memory_space<vmem>>, vector<256x512xi32>
    %c1000_i32 = arith.constant 1000 : i32
    %c0_i32 = arith.constant 0 : i32
    %1 = arith.cmpi eq, %c1000_i32, %c0_i32 : i32
    %c1_i32 = arith.constant 1 : i32
    %2 = arith.select %1, %c1_i32, %c1000_i32 : i32
    %3 = vector.broadcast %2 : i32 to vector<256x512xi32>
    %4 = arith.remsi %0, %3 : vector<256x512xi32>
    %c0_i32_1 = arith.constant 0 : i32
    %5 = vector.broadcast %c0_i32_1 : i32 to vector<256x512xi32>
    %6 = arith.cmpi ne, %4, %5 : vector<256x512xi32>
    %c0_i32_2 = arith.constant 0 : i32
    %7 = vector.broadcast %c0_i32_2 : i32 to vector<256x512xi32>
    %8 = arith.cmpi slt, %4, %7 : vector<256x512xi32>
    %c0_i32_3 = arith.constant 0 : i32
    %9 = arith.cmpi slt, %2, %c0_i32_3 : i32
    %10 = vector.broadcast %9 : i1 to vector<256x512xi1>
    %11 = vector.broadcast %10 : vector<256x512xi1> to vector<256x512xi1>
    %12 = arith.xori %8, %11 : vector<256x512xi1>
    %13 = arith.andi %12, %6 : vector<256x512xi1>
    %14 = vector.broadcast %2 : i32 to vector<256x512xi32>
    %15 = arith.addi %4, %14 : vector<256x512xi32>
    %16 = arith.select %13, %15, %4 : vector<256x512xi1>, vector<256x512xi32>
    %c0_4 = arith.constant 0 : index
    %c0_5 = arith.constant 0 : index
    %17 = vector.load %arg2[%c0_4, %c0_5] : memref<256x512xi32, #tpu.memory_space<vmem>>, vector<256x512xi32>
    tpu.vector_store %arg2[%c0_4, %c0_5], %16 {strides = array<i32>} : memref<256x512xi32, #tpu.memory_space<vmem>>, vector<256x512xi32>,
    return
  }
  func.func @transform_0(%arg0: i32) -> (i32, i32) {
    %c0_i32 = arith.constant 0 : i32
    %c0_i32_0 = arith.constant 0 : i32
    return %arg0, %c0_i32 : i32, i32
  }
  func.func @transform_1(%arg0: i32) -> (i32, i32) {
    %c0_i32 = arith.constant 0 : i32
    %c0_i32_0 = arith.constant 0 : i32
    return %arg0, %c0_i32 : i32, i32
  }
}

</mosaic_0001>

<llo_original>
// kernel: tpu_custom_call.1
$region0: #{tpu_custom_call.1}
  #allocation0 [shape = 'u32[]', space=smem, size = 0x4, offset = 0x4, fixed_abs, tag = 'smem constant byte address 0x4 - core index']
  #allocation1 [shape = 'u32[144,128]{1,0:T(1,128)}', space=vmem, size = 0x12000, scoped, tag = 'internal scratch']
  %s0 = inlined_call_operand.hbm [shape: s32[293,512], index: 0, kind: input, shape index: {}]
  %s1 = inlined_call_operand.hbm [shape: s32[293,512], index: 1, kind: output, shape index: {}]
  %s2 = sld [smem:[#allocation0]]
  $region41: #{tpu_custom_call.1} parent=0
    _
  %s4 = ssub.s32 1, %s2
  %s5 = scalar_select 0, %s4, %s2
  $region1: #{tpu_custom_call.1} parent=0
    #allocation2 [shape = 'u8[1048576]{0}', space=vmem, size = 0x100000, scoped, tag = 'input window, operand 0']
    #allocation3 [shape = 's32[2]{0}', space=sflag, size = 0x8, scoped, tag = 'scoped memory for tpu_custom_call.1']
    #allocation4 [shape = 's32[2]{0}', space=sflag, size = 0x8, scoped, tag = 'scoped memory for tpu_custom_call.1']
    #allocation5 [shape = 'u8[1048576]{0}', space=vmem, size = 0x100000, scoped, tag = 'output window, operand 0']
    %6 = vsyncpa [#allocation3], 0
    %s7 = scalar_lea.sflag [#allocation3], 1
    %8 = vsyncpa %s7, 0
    %9 = vsyncpa [#allocation4], 0
    %s10 = scalar_lea.sflag [#allocation4], 1
    %11 = vsyncpa %s10, 0
    loop: start=0, step=1, limit=4
    $region2: #{tpu_custom_call.1} parent=1 // loop_pre_header
      _
    $region3: #{tpu_custom_call.1} parent=1 // loop_header
      %s13 = sphi 0, %s17
      %p14 = scmp.ge.s32.totalorder %s13, 4
      %s23 = sphi 0, %s25
      %s26 = sphi 0, %s23
      %s27 = sphi 0, %s26
      %s43 = sphi 0, %s27
      %s49 = sphi 0, %s51
      %s52 = sphi 0, %s49
      %s53 = sphi 0, %s52
      %s69 = sphi 0, %s53
    $region4: #{tpu_custom_call.1} parent=1 // loop_header_branch
      %16 = sbr.rel (%p14) target = $region8
    $region5: #{tpu_custom_call.1} parent=1 // loop_body
      %s18 = ssub.s32 %s13, 1
      %s19 = ssub.s32 %s13, 2
      %s20 = sadd.s32 %s13, 1
      %s21 = ssub.s32 %s13, %s20
      %p22 = scmp.eq.s32.totalorder %s21, 0
      %s24 = sadd.s32 %s23, 1
      %s25 = scalar_select %p22, %s23, %s24
      %p28 = pneg %p22
      %p29 = scmp.eq.s32.totalorder %s13, 1
      %p30 = por %p28, %p29
      %p31 = scmp.ne.s32.totalorder %s23, %s26
      %p32 = scmp.eq.s32.totalorder %s13, 0
      %p33 = por %p31, %p32
      %p34 = scmp.ne.s32.totalorder %s23, %s26
      %p35 = scmp.eq.s32.totalorder %s18, 1
      %p36 = por %p34, %p35
      %p37 = scmp.ne.s32.totalorder %s26, %s27
      %p38 = scmp.eq.s32.totalorder %s18, 0
      %p39 = por %p37, %p38
      %p40 = scmp.ne.s32.totalorder %s26, %s27
      %p41 = scmp.eq.s32.totalorder %s19, 1
      %p42 = por %p40, %p41
      %p44 = scmp.ne.s32.totalorder %s27, %s43
      %p45 = scmp.eq.s32.totalorder %s19, 0
      %p46 = por %p44, %p45
      %s47 = ssub.s32 %s13, %s20
      %p48 = scmp.eq.s32.totalorder %s47, 0
      %s50 = sadd.s32 %s49, 1
      %s51 = scalar_select %p48, %s49, %s50
      %p54 = pneg %p48
      %p55 = scmp.eq.s32.totalorder %s13, 1
      %p56 = por %p54, %p55
      %p57 = scmp.ne.s32.totalorder %s49, %s52
      %p58 = scmp.eq.s32.totalorder %s13, 0
      %p59 = por %p57, %p58
      %p60 = scmp.ne.s32.totalorder %s49, %s52
      %p61 = scmp.eq.s32.totalorder %s18, 1
      %p62 = por %p60, %p61
      %p63 = scmp.ne.s32.totalorder %s52, %s53
      %p64 = scmp.eq.s32.totalorder %s18, 0
      %p65 = por %p63, %p64
      %p66 = scmp.ne.s32.totalorder %s52, %s53
      %p67 = scmp.eq.s32.totalorder %s19, 1
      %p68 = por %p66, %p67
      %p70 = scmp.ne.s32.totalorder %s53, %s69
      %p71 = scmp.eq.s32.totalorder %s19, 0
      %p72 = por %p70, %p71
      %p73 = scmp.le.s32.totalorder 1, %s13
      %p74 = scmp.lt.s32.totalorder %s13, 3
      %p75 = pnand %p73, %p74
      %p76 = pneg %p75
      // Predicated region
      $region9: #{tpu_custom_call.1} parent=5 // pred_check
        _
      $region10: #{tpu_custom_call.1} parent=5 // pred_check_branch
        %78 = sbr.rel (%p75) target = $region12
      $region11: #{tpu_custom_call.1} parent=5 // pred_region
        %s79 = ssub.s32 %s13, 1
      $region12: #{tpu_custom_call.1} parent=5 // pred_fallthru
        _
      %p80 = scmp.lt.s32.totalorder %s13, 2
      // Predicated region
      $region13: #{tpu_custom_call.1} parent=5 // pred_check
        %p81 = pneg %p80
      $region14: #{tpu_custom_call.1} parent=5 // pred_check_branch
        %83 = sbr.rel (%p81) target = $region16
      $region15: #{tpu_custom_call.1} parent=5 // pred_region
        // Predicated region
        $region17: #{tpu_custom_call.1} parent=15 // pred_check
          %p84 = pneg %p33
        $region18: #{tpu_custom_call.1} parent=15 // pred_check_branch
          %86 = sbr.rel (%p84) target = $region20
        $region19: #{tpu_custom_call.1} parent=15 // pred_region
          %s87 = sand.u32 %s23, 1
          %s88 = scalar_lea.sflag [#allocation3], %s87
          %s89 = sand.u32 %s23, 1
          %s90 = smul.addr %s89, 1024
          %s91 = scalar_lea.vmem [#allocation2], %s90
          %s92 = smul.u32 32, %s13
          %s93 = ssub.s32 37, %s92
          %p94 = scmp.lt.s32.totalorder %s93, 32
          %s95 = scalar_select %p94, %s93, 32
          %s96 = smul.u32 128, %s95
          %s97 = smul.u32 %s96, 4
          %s99 = ssub.s32 16384, %s97
          %100 = vsyncadd %s88, %s99
          %p101 = scmp.ne.s32.totalorder 0, %s97
          %s102 = smul.addr %s92, 4
          %s103 = smul.addr %s102, 128
          %s104 = scalar_lea.hbm %s0, %s103
          %s105 = smul.u32 32, %s95
          %s106 = sshll.u32 %s91, 4
          %s107 = int_to_ptr.vmem [resolvable:$true] %s106
          %s108 = sshll.u32 %s105, 4
          %112 = dma.hbm_to_vmem [thread:$0]  (%p101), %s104, %s108, %s107, %s88, 512, 512, 32
        $region20: #{tpu_custom_call.1} parent=15 // pred_fallthru
          _
      $region16: #{tpu_custom_call.1} parent=5 // pred_fallthru
        _
      %p113 = scmp.le.s32.totalorder 1, %s13
      %p114 = scmp.lt.s32.totalorder %s13, 3
      %p115 = pnand %p113, %p114
      %p116 = pneg %p115
      // Predicated region
      $region21: #{tpu_custom_call.1} parent=5 // pred_check
        _
      $region22: #{tpu_custom_call.1} parent=5 // pred_check_branch
        %118 = sbr.rel (%p115) target = $region24
      $region23: #{tpu_custom_call.1} parent=5 // pred_region
        %s119 = ssub.s32 %s13, 1
        %s120 = sand.u32 %s26, 1
        %s121 = scalar_lea.sflag [#allocation3], %s120
        %s122 = sand.u32 %s26, 1
        %s123 = smul.addr %s122, 1024
        %s124 = scalar_lea.vmem [#allocation2], %s123
        // Predicated region
        $region25: #{tpu_custom_call.1} parent=23 // pred_check
          %p125 = pneg %p39
        $region26: #{tpu_custom_call.1} parent=23 // pred_check_branch
          %127 = sbr.rel (%p125) target = $region28
        $region27: #{tpu_custom_call.1} parent=23 // pred_region
          %128 = dma.done %s121, 16384
        $region28: #{tpu_custom_call.1} parent=23 // pred_fallthru
          _
        %s129 = sand.u32 %s26, 1
        %s130 = scalar_lea.sflag [#allocation3], %s129
        %s131 = sand.u32 %s26, 1
        %s132 = smul.addr %s131, 1024
        %s133 = scalar_lea.vmem [#allocation2], %s132
        %p134 = pneg %p39
        %p135 = pneg %p36
        %p136 = pneg %p65
        %p137 = pneg %p62
        %s138 = sand.u32 %s52, 1
        %s139 = scalar_lea.sflag [#allocation4], %s138
        %s140 = sand.u32 %s52, 1
        %s141 = smul.addr %s140, 1024
        %s142 = scalar_lea.vmem [#allocation5], %s141
        %s143 = smul.u32 32, %s18
        %s144 = ssub.s32 37, %s143
        %p145 = scmp.lt.s32.totalorder %s144, 32
        %s146 = scalar_select %p145, %s144, 32
        %s147 = smul.u32 128, %s146
        %s148 = smul.u32 %s147, 4
        %s149 = smul.u32 32, %s18
        %s150 = ssub.s32 37, %s149
        %p151 = scmp.lt.s32.totalorder %s150, 32
        %s152 = scalar_select %p151, %s150, 32
        %s153 = smul.u32 128, %s152
        %s154 = smul.u32 %s153, 4
        %v155 = vld [vmem:[%s124] sm:$0xff]
        %v156 = vld [vmem:[%s124 + $0x8] sm:$0xff]
        %v157 = vld [vmem:[%s124 + $0x10] sm:$0xff]
        %v158 = vld [vmem:[%s124 + $0x18] sm:$0xff]
        %v159 = vld [vmem:[%s124 + $0x20] sm:$0xff]
        %v160 = vld [vmem:[%s124 + $0x28] sm:$0xff]
        %v161 = vld [vmem:[%s124 + $0x30] sm:$0xff]
        %v162 = vld [vmem:[%s124 + $0x38] sm:$0xff]
        %v163 = vld [vmem:[%s124 + $0x40] sm:$0xff]
        %v164 = vld [vmem:[%s124 + $0x48] sm:$0xff]
        %v165 = vld [vmem:[%s124 + $0x50] sm:$0xff]
        %v166 = vld [vmem:[%s124 + $0x58] sm:$0xff]
        %v167 = vld [vmem:[%s124 + $0x60] sm:$0xff]
        %v168 = vld [vmem:[%s124 + $0x68] sm:$0xff]
        %v169 = vld [vmem:[%s124 + $0x70] sm:$0xff]
        %v170 = vld [vmem:[%s124 + $0x78] sm:$0xff]
        %v171 = vld [vmem:[%s124 + $0x80] sm:$0xff]
        %v172 = vld [vmem:[%s124 + $0x88] sm:$0xff]
        %v173 = vld [vmem:[%s124 + $0x90] sm:$0xff]
        %v174 = vld [vmem:[%s124 + $0x98] sm:$0xff]
        %v175 = vld [vmem:[%s124 + $0xa0] sm:$0xff]
        %v176 = vld [vmem:[%s124 + $0xa8] sm:$0xff]
        %v177 = vld [vmem:[%s124 + $0xb0] sm:$0xff]
        %v178 = vld [vmem:[%s124 + $0xb8] sm:$0xff]
        %v179 = vld [vmem:[%s124 + $0xc0] sm:$0xff]
        %v180 = vld [vmem:[%s124 + $0xc8] sm:$0xff]
        %v181 = vld [vmem:[%s124 + $0xd0] sm:$0xff]
        %v182 = vld [vmem:[%s124 + $0xd8] sm:$0xff]
        %v183 = vld [vmem:[%s124 + $0xe0] sm:$0xff]
        %v184 = vld [vmem:[%s124 + $0xe8] sm:$0xff]
        %v185 = vld [vmem:[%s124 + $0xf0] sm:$0xff]
        %v186 = vld [vmem:[%s124 + $0xf8] sm:$0xff]
        %v187 = vld [vmem:[%s124 + $0x100] sm:$0xff]
        %v188 = vld [vmem:[%s124 + $0x108] sm:$0xff]
        %v189 = vld [vmem:[%s124 + $0x110] sm:$0xff]
        %v190 = vld [vmem:[%s124 + $0x118] sm:$0xff]
        %v191 = vld [vmem:[%s124 + $0x120] sm:$0xff]
        %v192 = vld [vmem:[%s124 + $0x128] sm:$0xff]
        %v193 = vld [vmem:[%s124 + $0x130] sm:$0xff]
        %v194 = vld [vmem:[%s124 + $0x138] sm:$0xff]
        %v195 = vld [vmem:[%s124 + $0x140] sm:$0xff]
        %v196 = vld [vmem:[%s124 + $0x148] sm:$0xff]
        %v197 = vld [vmem:[%s124 + $0x150] sm:$0xff]
        %v198 = vld [vmem:[%s124 + $0x158] sm:$0xff]
        %v199 = vld [vmem:[%s124 + $0x160] sm:$0xff]
        %v200 = vld [vmem:[%s124 + $0x168] sm:$0xff]
        %v201 = vld [vmem:[%s124 + $0x170] sm:$0xff]
        %v202 = vld [vmem:[%s124 + $0x178] sm:$0xff]
        %v203 = vld [vmem:[%s124 + $0x180] sm:$0xff]
        %v204 = vld [vmem:[%s124 + $0x188] sm:$0xff]
        %v205 = vld [vmem:[%s124 + $0x190] sm:$0xff]
        %v206 = vld [vmem:[%s124 + $0x198] sm:$0xff]
        %v207 = vld [vmem:[%s124 + $0x1a0] sm:$0xff]
        %v208 = vld [vmem:[%s124 + $0x1a8] sm:$0xff]
        %v209 = vld [vmem:[%s124 + $0x1b0] sm:$0xff]
        %v210 = vld [vmem:[%s124 + $0x1b8] sm:$0xff]
        %v211 = vld [vmem:[%s124 + $0x1c0] sm:$0xff]
        %v212 = vld [vmem:[%s124 + $0x1c8] sm:$0xff]
        %v213 = vld [vmem:[%s124 + $0x1d0] sm:$0xff]
        %v214 = vld [vmem:[%s124 + $0x1d8] sm:$0xff]
        %v215 = vld [vmem:[%s124 + $0x1e0] sm:$0xff]
        %v216 = vld [vmem:[%s124 + $0x1e8] sm:$0xff]
        %v217 = vld [vmem:[%s124 + $0x1f0] sm:$0xff]
        %v218 = vld [vmem:[%s124 + $0x1f8] sm:$0xff]
        %v219 = vld [vmem:[%s124 + $0x200] sm:$0xff]
        %v220 = vld [vmem:[%s124 + $0x208] sm:$0xff]
        %v221 = vld [vmem:[%s124 + $0x210] sm:$0xff]
        %v222 = vld [vmem:[%s124 + $0x218] sm:$0xff]
        %v223 = vld [vmem:[%s124 + $0x220] sm:$0xff]
        %v224 = vld [vmem:[%s124 + $0x228] sm:$0xff]
        %v225 = vld [vmem:[%s124 + $0x230] sm:$0xff]
        %v226 = vld [vmem:[%s124 + $0x238] sm:$0xff]
        %v227 = vld [vmem:[%s124 + $0x240] sm:$0xff]
        %v228 = vld [vmem:[%s124 + $0x248] sm:$0xff]
        %v229 = vld [vmem:[%s124 + $0x250] sm:$0xff]
        %v230 = vld [vmem:[%s124 + $0x258] sm:$0xff]
        %v231 = vld [vmem:[%s124 + $0x260] sm:$0xff]
        %v232 = vld [vmem:[%s124 + $0x268] sm:$0xff]
        %v233 = vld [vmem:[%s124 + $0x270] sm:$0xff]
        %v234 = vld [vmem:[%s124 + $0x278] sm:$0xff]
        %v235 = vld [vmem:[%s124 + $0x280] sm:$0xff]
        %v236 = vld [vmem:[%s124 + $0x288] sm:$0xff]
        %v237 = vld [vmem:[%s124 + $0x290] sm:$0xff]
        %v238 = vld [vmem:[%s124 + $0x298] sm:$0xff]
        %v239 = vld [vmem:[%s124 + $0x2a0] sm:$0xff]
        %v240 = vld [vmem:[%s124 + $0x2a8] sm:$0xff]
        %v241 = vld [vmem:[%s124 + $0x2b0] sm:$0xff]
        %v242 = vld [vmem:[%s124 + $0x2b8] sm:$0xff]
        %v243 = vld [vmem:[%s124 + $0x2c0] sm:$0xff]
        %v244 = vld [vmem:[%s124 + $0x2c8] sm:$0xff]
        %v245 = vld [vmem:[%s124 + $0x2d0] sm:$0xff]
        %v246 = vld [vmem:[%s124 + $0x2d8] sm:$0xff]
        %v247 = vld [vmem:[%s124 + $0x2e0] sm:$0xff]
        %v248 = vld [vmem:[%s124 + $0x2e8] sm:$0xff]
        %v249 = vld [vmem:[%s124 + $0x2f0] sm:$0xff]
        %v250 = vld [vmem:[%s124 + $0x2f8] sm:$0xff]
        %v251 = vld [vmem:[%s124 + $0x300] sm:$0xff]
        %v252 = vld [vmem:[%s124 + $0x308] sm:$0xff]
        %v253 = vld [vmem:[%s124 + $0x310] sm:$0xff]
        %v254 = vld [vmem:[%s124 + $0x318] sm:$0xff]
        %v255 = vld [vmem:[%s124 + $0x320] sm:$0xff]
        %v256 = vld [vmem:[%s124 + $0x328] sm:$0xff]
        %v257 = vld [vmem:[%s124 + $0x330] sm:$0xff]
        %v258 = vld [vmem:[%s124 + $0x338] sm:$0xff]
        %v259 = vld [vmem:[%s124 + $0x340] sm:$0xff]
        %v260 = vld [vmem:[%s124 + $0x348] sm:$0xff]
        %v261 = vld [vmem:[%s124 + $0x350] sm:$0xff]
        %v262 = vld [vmem:[%s124 + $0x358] sm:$0xff]
        %v263 = vld [vmem:[%s124 + $0x360] sm:$0xff]
        %v264 = vld [vmem:[%s124 + $0x368] sm:$0xff]
        %v265 = vld [vmem:[%s124 + $0x370] sm:$0xff]
        %v266 = vld [vmem:[%s124 + $0x378] sm:$0xff]
        %v267 = vld [vmem:[%s124 + $0x380] sm:$0xff]
        %v268 = vld [vmem:[%s124 + $0x388] sm:$0xff]
        %v269 = vld [vmem:[%s124 + $0x390] sm:$0xff]
        %v270 = vld [vmem:[%s124 + $0x398] sm:$0xff]
        %v271 = vld [vmem:[%s124 + $0x3a0] sm:$0xff]
        %v272 = vld [vmem:[%s124 + $0x3a8] sm:$0xff]
        %v273 = vld [vmem:[%s124 + $0x3b0] sm:$0xff]
        %v274 = vld [vmem:[%s124 + $0x3b8] sm:$0xff]
        %v275 = vld [vmem:[%s124 + $0x3c0] sm:$0xff]
        %v276 = vld [vmem:[%s124 + $0x3c8] sm:$0xff]
        %v277 = vld [vmem:[%s124 + $0x3d0] sm:$0xff]
        %v278 = vld [vmem:[%s124 + $0x3d8] sm:$0xff]
        %v279 = vld [vmem:[%s124 + $0x3e0] sm:$0xff]
        %v280 = vld [vmem:[%s124 + $0x3e8] sm:$0xff]
        %v281 = vld [vmem:[%s124 + $0x3f0] sm:$0xff]
        %v282 = vld [vmem:[%s124 + $0x3f8] sm:$0xff]
        %vm283 = vcmp.lt.s32.totalorder %v155, 0
        %v284 = vsub.s32 0, %v155
        %v285 = vsel %vm283, %v284, %v155
        %v286 = vmul.u32.u64.compose %v285, 2199023256
        %v287 = vextract.low.u32 %v286
        %v288 = vextract.high.u32 %v286
        %v289 = vshrl.u32 %v288, 9
        %v290 = vmul.u32 %v289, 1000
        %v291 = vsub.s32 %v285, %v290
        %v292 = vsub.s32 0, %v291
        %v293 = vsel %vm283, %v292, %v291
        %vm294 = vcmp.lt.s32.totalorder %v156, 0
        %v295 = vsub.s32 0, %v156
        %v296 = vsel %vm294, %v295, %v156
        %v297 = vmul.u32.u64.compose %v296, 2199023256
        %v298 = vextract.low.u32 %v297
        %v299 = vextract.high.u32 %v297
        %v300 = vshrl.u32 %v299, 9
        %v301 = vmul.u32 %v300, 1000
        %v302 = vsub.s32 %v296, %v301
        %v303 = vsub.s32 0, %v302
        %v304 = vsel %vm294, %v303, %v302
        %vm305 = vcmp.lt.s32.totalorder %v157, 0
        %v306 = vsub.s32 0, %v157
        %v307 = vsel %vm305, %v306, %v157
        %v308 = vmul.u32.u64.compose %v307, 2199023256
        %v309 = vextract.low.u32 %v308
        %v310 = vextract.high.u32 %v308
        %v311 = vshrl.u32 %v310, 9
        %v312 = vmul.u32 %v311, 1000
        %v313 = vsub.s32 %v307, %v312
        %v314 = vsub.s32 0, %v313
        %v315 = vsel %vm305, %v314, %v313
        %vm316 = vcmp.lt.s32.totalorder %v158, 0
        %v317 = vsub.s32 0, %v158
        %v318 = vsel %vm316, %v317, %v158
        %v319 = vmul.u32.u64.compose %v318, 2199023256
        %v320 = vextract.low.u32 %v319
        %v321 = vextract.high.u32 %v319
        %v322 = vshrl.u32 %v321, 9
        %v323 = vmul.u32 %v322, 1000
        %v324 = vsub.s32 %v318, %v323
        %v325 = vsub.s32 0, %v324
        %v326 = vsel %vm316, %v325, %v324
        %vm327 = vcmp.lt.s32.totalorder %v159, 0
        %v328 = vsub.s32 0, %v159
        %v329 = vsel %vm327, %v328, %v159
        %v330 = vmul.u32.u64.compose %v329, 2199023256
        %v331 = vextract.low.u32 %v330
        %v332 = vextract.high.u32 %v330
        %v333 = vshrl.u32 %v332, 9
        %v334 = vmul.u32 %v333, 1000
        %v335 = vsub.s32 %v329, %v334
        %v336 = vsub.s32 0, %v335
        %v337 = vsel %vm327, %v336, %v335
        %vm338 = vcmp.lt.s32.totalorder %v160, 0
        %v339 = vsub.s32 0, %v160
        %v340 = vsel %vm338, %v339, %v160
        %v341 = vmul.u32.u64.compose %v340, 2199023256
        %v342 = vextract.low.u32 %v341
        %v343 = vextract.high.u32 %v341
        %v344 = vshrl.u32 %v343, 9
        %v345 = vmul.u32 %v344, 1000
        %v346 = vsub.s32 %v340, %v345
        %v347 = vsub.s32 0, %v346
        %v348 = vsel %vm338, %v347, %v346
        %vm349 = vcmp.lt.s32.totalorder %v161, 0
        %v350 = vsub.s32 0, %v161
        %v351 = vsel %vm349, %v350, %v161
        %v352 = vmul.u32.u64.compose %v351, 2199023256
        %v353 = vextract.low.u32 %v352
        %v354 = vextract.high.u32 %v352
        %v355 = vshrl.u32 %v354, 9
        %v356 = vmul.u32 %v355, 1000
        %v357 = vsub.s32 %v351, %v356
        %v358 = vsub.s32 0, %v357
        %v359 = vsel %vm349, %v358, %v357
        %vm360 = vcmp.lt.s32.totalorder %v162, 0
        %v361 = vsub.s32 0, %v162
        %v362 = vsel %vm360, %v361, %v162
        %v363 = vmul.u32.u64.compose %v362, 2199023256
        %v364 = vextract.low.u32 %v363
        %v365 = vextract.high.u32 %v363
        %v366 = vshrl.u32 %v365, 9
        %v367 = vmul.u32 %v366, 1000
        %v368 = vsub.s32 %v362, %v367
        %v369 = vsub.s32 0, %v368
        %v370 = vsel %vm360, %v369, %v368
        %vm371 = vcmp.lt.s32.totalorder %v163, 0
        %v372 = vsub.s32 0, %v163
        %v373 = vsel %vm371, %v372, %v163
        %v374 = vmul.u32.u64.compose %v373, 2199023256
        %v375 = vextract.low.u32 %v374
        %v376 = vextract.high.u32 %v374
        %v377 = vshrl.u32 %v376, 9
        %v378 = vmul.u32 %v377, 1000
        %v379 = vsub.s32 %v373, %v378
        %v380 = vsub.s32 0, %v379
        %v381 = vsel %vm371, %v380, %v379
        %vm382 = vcmp.lt.s32.totalorder %v164, 0
        %v383 = vsub.s32 0, %v164
        %v384 = vsel %vm382, %v383, %v164
        %v385 = vmul.u32.u64.compose %v384, 2199023256
        %v386 = vextract.low.u32 %v385
        %v387 = vextract.high.u32 %v385
        %v388 = vshrl.u32 %v387, 9
        %v389 = vmul.u32 %v388, 1000
        %v390 = vsub.s32 %v384, %v389
        %v391 = vsub.s32 0, %v390
        %v392 = vsel %vm382, %v391, %v390
        %vm393 = vcmp.lt.s32.totalorder %v165, 0
        %v394 = vsub.s32 0, %v165
        %v395 = vsel %vm393, %v394, %v165
        %v396 = vmul.u32.u64.compose %v395, 2199023256
        %v397 = vextract.low.u32 %v396
        %v398 = vextract.high.u32 %v396
        %v399 = vshrl.u32 %v398, 9
        %v400 = vmul.u32 %v399, 1000
        %v401 = vsub.s32 %v395, %v400
        %v402 = vsub.s32 0, %v401
        %v403 = vsel %vm393, %v402, %v401
        %vm404 = vcmp.lt.s32.totalorder %v166, 0
        %v405 = vsub.s32 0, %v166
        %v406 = vsel %vm404, %v405, %v166
        %v407 = vmul.u32.u64.compose %v406, 2199023256
        %v408 = vextract.low.u32 %v407
        %v409 = vextract.high.u32 %v407
        %v410 = vshrl.u32 %v409, 9
        %v411 = vmul.u32 %v410, 1000
        %v412 = vsub.s32 %v406, %v411
        %v413 = vsub.s32 0, %v412
        %v414 = vsel %vm404, %v413, %v412
        %vm415 = vcmp.lt.s32.totalorder %v167, 0
        %v416 = vsub.s32 0, %v167
        %v417 = vsel %vm415, %v416, %v167
        %v418 = vmul.u32.u64.compose %v417, 2199023256
        %v419 = vextract.low.u32 %v418
        %v420 = vextract.high.u32 %v418
        %v421 = vshrl.u32 %v420, 9
        %v422 = vmul.u32 %v421, 1000
        %v423 = vsub.s32 %v417, %v422
        %v424 = vsub.s32 0, %v423
        %v425 = vsel %vm415, %v424, %v423
        %vm426 = vcmp.lt.s32.totalorder %v168, 0
        %v427 = vsub.s32 0, %v168
        %v428 = vsel %vm426, %v427, %v168
        %v429 = vmul.u32.u64.compose %v428, 2199023256
        %v430 = vextract.low.u32 %v429
        %v431 = vextract.high.u32 %v429
        %v432 = vshrl.u32 %v431, 9
        %v433 = vmul.u32 %v432, 1000
        %v434 = vsub.s32 %v428, %v433
        %v435 = vsub.s32 0, %v434
        %v436 = vsel %vm426, %v435, %v434
        %vm437 = vcmp.lt.s32.totalorder %v169, 0
        %v438 = vsub.s32 0, %v169
        %v439 = vsel %vm437, %v438, %v169
        %v440 = vmul.u32.u64.compose %v439, 2199023256
        %v441 = vextract.low.u32 %v440
        %v442 = vextract.high.u32 %v440
        %v443 = vshrl.u32 %v442, 9
        %v444 = vmul.u32 %v443, 1000
        %v445 = vsub.s32 %v439, %v444
        %v446 = vsub.s32 0, %v445
        %v447 = vsel %vm437, %v446, %v445
        %vm448 = vcmp.lt.s32.totalorder %v170, 0
        %v449 = vsub.s32 0, %v170
        %v450 = vsel %vm448, %v449, %v170
        %v451 = vmul.u32.u64.compose %v450, 2199023256
        %v452 = vextract.low.u32 %v451
        %v453 = vextract.high.u32 %v451
        %v454 = vshrl.u32 %v453, 9
        %v455 = vmul.u32 %v454, 1000
        %v456 = vsub.s32 %v450, %v455
        %v457 = vsub.s32 0, %v456
        %v458 = vsel %vm448, %v457, %v456
        %vm459 = vcmp.lt.s32.totalorder %v171, 0
        %v460 = vsub.s32 0, %v171
        %v461 = vsel %vm459, %v460, %v171
        %v462 = vmul.u32.u64.compose %v461, 2199023256
        %v463 = vextract.low.u32 %v462
        %v464 = vextract.high.u32 %v462
        %v465 = vshrl.u32 %v464, 9
        %v466 = vmul.u32 %v465, 1000
        %v467 = vsub.s32 %v461, %v466
        %v468 = vsub.s32 0, %v467
        %v469 = vsel %vm459, %v468, %v467
        %vm470 = vcmp.lt.s32.totalorder %v172, 0
        %v471 = vsub.s32 0, %v172
        %v472 = vsel %vm470, %v471, %v172
        %v473 = vmul.u32.u64.compose %v472, 2199023256
        %v474 = vextract.low.u32 %v473
        %v475 = vextract.high.u32 %v473
        %v476 = vshrl.u32 %v475, 9
        %v477 = vmul.u32 %v476, 1000
        %v478 = vsub.s32 %v472, %v477
        %v479 = vsub.s32 0, %v478
        %v480 = vsel %vm470, %v479, %v478
        %vm481 = vcmp.lt.s32.totalorder %v173, 0
        %v482 = vsub.s32 0, %v173
        %v483 = vsel %vm481, %v482, %v173
        %v484 = vmul.u32.u64.compose %v483, 2199023256
        %v485 = vextract.low.u32 %v484
        %v486 = vextract.high.u32 %v484
        %v487 = vshrl.u32 %v486, 9
        %v488 = vmul.u32 %v487, 1000
        %v489 = vsub.s32 %v483, %v488
        %v490 = vsub.s32 0, %v489
        %v491 = vsel %vm481, %v490, %v489
        %vm492 = vcmp.lt.s32.totalorder %v174, 0
        %v493 = vsub.s32 0, %v174
        %v494 = vsel %vm492, %v493, %v174
        %v495 = vmul.u32.u64.compose %v494, 2199023256
        %v496 = vextract.low.u32 %v495
        %v497 = vextract.high.u32 %v495
        %v498 = vshrl.u32 %v497, 9
        %v499 = vmul.u32 %v498, 1000
        %v500 = vsub.s32 %v494, %v499
        %v501 = vsub.s32 0, %v500
        %v502 = vsel %vm492, %v501, %v500
        %vm503 = vcmp.lt.s32.totalorder %v175, 0
        %v504 = vsub.s32 0, %v175
        %v505 = vsel %vm503, %v504, %v175
        %v506 = vmul.u32.u64.compose %v505, 2199023256
        %v507 = vextract.low.u32 %v506
        %v508 = vextract.high.u32 %v506
        %v509 = vshrl.u32 %v508, 9
        %v510 = vmul.u32 %v509, 1000
        %v511 = vsub.s32 %v505, %v510
        %v512 = vsub.s32 0, %v511
        %v513 = vsel %vm503, %v512, %v511
        %vm514 = vcmp.lt.s32.totalorder %v176, 0
        %v515 = vsub.s32 0, %v176
        %v516 = vsel %vm514, %v515, %v176
        %v517 = vmul.u32.u64.compose %v516, 2199023256
        %v518 = vextract.low.u32 %v517
        %v519 = vextract.high.u32 %v517
        %v520 = vshrl.u32 %v519, 9
        %v521 = vmul.u32 %v520, 1000
        %v522 = vsub.s32 %v516, %v521
        %v523 = vsub.s32 0, %v522
        %v524 = vsel %vm514, %v523, %v522
        %vm525 = vcmp.lt.s32.totalorder %v177, 0
        %v526 = vsub.s32 0, %v177
        %v527 = vsel %vm525, %v526, %v177
        %v528 = vmul.u32.u64.compose %v527, 2199023256
        %v529 = vextract.low.u32 %v528
        %v530 = vextract.high.u32 %v528
        %v531 = vshrl.u32 %v530, 9
        %v532 = vmul.u32 %v531, 1000
        %v533 = vsub.s32 %v527, %v532
        %v534 = vsub.s32 0, %v533
        %v535 = vsel %vm525, %v534, %v533
        %vm536 = vcmp.lt.s32.totalorder %v178, 0
        %v537 = vsub.s32 0, %v178
        %v538 = vsel %vm536, %v537, %v178
        %v539 = vmul.u32.u64.compose %v538, 2199023256
        %v540 = vextract.low.u32 %v539
        %v541 = vextract.high.u32 %v539
        %v542 = vshrl.u32 %v541, 9
        %v543 = vmul.u32 %v542, 1000
        %v544 = vsub.s32 %v538, %v543
        %v545 = vsub.s32 0, %v544
        %v546 = vsel %vm536, %v545, %v544
        %vm547 = vcmp.lt.s32.totalorder %v179, 0
        %v548 = vsub.s32 0, %v179
        %v549 = vsel %vm547, %v548, %v179
        %v550 = vmul.u32.u64.compose %v549, 2199023256
        %v551 = vextract.low.u32 %v550
        %v552 = vextract.high.u32 %v550
        %v553 = vshrl.u32 %v552, 9
        %v554 = vmul.u32 %v553, 1000
        %v555 = vsub.s32 %v549, %v554
        %v556 = vsub.s32 0, %v555
        %v557 = vsel %vm547, %v556, %v555
        %vm558 = vcmp.lt.s32.totalorder %v180, 0
        %v559 = vsub.s32 0, %v180
        %v560 = vsel %vm558, %v559, %v180
        %v561 = vmul.u32.u64.compose %v560, 2199023256
        %v562 = vextract.low.u32 %v561
        %v563 = vextract.high.u32 %v561
        %v564 = vshrl.u32 %v563, 9
        %v565 = vmul.u32 %v564, 1000
        %v566 = vsub.s32 %v560, %v565
        %v567 = vsub.s32 0, %v566
        %v568 = vsel %vm558, %v567, %v566
        %vm569 = vcmp.lt.s32.totalorder %v181, 0
        %v570 = vsub.s32 0, %v181
        %v571 = vsel %vm569, %v570, %v181
        %v572 = vmul.u32.u64.compose %v571, 2199023256
        %v573 = vextract.low.u32 %v572
        %v574 = vextract.high.u32 %v572
        %v575 = vshrl.u32 %v574, 9
        %v576 = vmul.u32 %v575, 1000
        %v577 = vsub.s32 %v571, %v576
        %v578 = vsub.s32 0, %v577
        %v579 = vsel %vm569, %v578, %v577
        %vm580 = vcmp.lt.s32.totalorder %v182, 0
        %v581 = vsub.s32 0, %v182
        %v582 = vsel %vm580, %v581, %v182
        %v583 = vmul.u32.u64.compose %v582, 2199023256
        %v584 = vextract.low.u32 %v583
        %v585 = vextract.high.u32 %v583
        %v586 = vshrl.u32 %v585, 9
        %v587 = vmul.u32 %v586, 1000
        %v588 = vsub.s32 %v582, %v587
        %v589 = vsub.s32 0, %v588
        %v590 = vsel %vm580, %v589, %v588
        %vm591 = vcmp.lt.s32.totalorder %v183, 0
        %v592 = vsub.s32 0, %v183
        %v593 = vsel %vm591, %v592, %v183
        %v594 = vmul.u32.u64.compose %v593, 2199023256
        %v595 = vextract.low.u32 %v594
        %v596 = vextract.high.u32 %v594
        %v597 = vshrl.u32 %v596, 9
        %v598 = vmul.u32 %v597, 1000
        %v599 = vsub.s32 %v593, %v598
        %v600 = vsub.s32 0, %v599
        %v601 = vsel %vm591, %v600, %v599
        %vm602 = vcmp.lt.s32.totalorder %v184, 0
        %v603 = vsub.s32 0, %v184
        %v604 = vsel %vm602, %v603, %v184
        %v605 = vmul.u32.u64.compose %v604, 2199023256
        %v606 = vextract.low.u32 %v605
        %v607 = vextract.high.u32 %v605
        %v608 = vshrl.u32 %v607, 9
        %v609 = vmul.u32 %v608, 1000
        %v610 = vsub.s32 %v604, %v609
        %v611 = vsub.s32 0, %v610
        %v612 = vsel %vm602, %v611, %v610
        %vm613 = vcmp.lt.s32.totalorder %v185, 0
        %v614 = vsub.s32 0, %v185
        %v615 = vsel %vm613, %v614, %v185
        %v616 = vmul.u32.u64.compose %v615, 2199023256
        %v617 = vextract.low.u32 %v616
        %v618 = vextract.high.u32 %v616
        %v619 = vshrl.u32 %v618, 9
        %v620 = vmul.u32 %v619, 1000
        %v621 = vsub.s32 %v615, %v620
        %v622 = vsub.s32 0, %v621
        %v623 = vsel %vm613, %v622, %v621
        %vm624 = vcmp.lt.s32.totalorder %v186, 0
        %v625 = vsub.s32 0, %v186
        %v626 = vsel %vm624, %v625, %v186
        %v627 = vmul.u32.u64.compose %v626, 2199023256
        %v628 = vextract.low.u32 %v627
        %v629 = vextract.high.u32 %v627
        %v630 = vshrl.u32 %v629, 9
        %v631 = vmul.u32 %v630, 1000
        %v632 = vsub.s32 %v626, %v631
        %v633 = vsub.s32 0, %v632
        %v634 = vsel %vm624, %v633, %v632
        %vm635 = vcmp.lt.s32.totalorder %v187, 0
        %v636 = vsub.s32 0, %v187
        %v637 = vsel %vm635, %v636, %v187
        %v638 = vmul.u32.u64.compose %v637, 2199023256
        %v639 = vextract.low.u32 %v638
        %v640 = vextract.high.u32 %v638
        %v641 = vshrl.u32 %v640, 9
        %v642 = vmul.u32 %v641, 1000
        %v643 = vsub.s32 %v637, %v642
        %v644 = vsub.s32 0, %v643
        %v645 = vsel %vm635, %v644, %v643
        %vm646 = vcmp.lt.s32.totalorder %v188, 0
        %v647 = vsub.s32 0, %v188
        %v648 = vsel %vm646, %v647, %v188
        %v649 = vmul.u32.u64.compose %v648, 2199023256
        %v650 = vextract.low.u32 %v649
        %v651 = vextract.high.u32 %v649
        %v652 = vshrl.u32 %v651, 9
        %v653 = vmul.u32 %v652, 1000
        %v654 = vsub.s32 %v648, %v653
        %v655 = vsub.s32 0, %v654
        %v656 = vsel %vm646, %v655, %v654
        %vm657 = vcmp.lt.s32.totalorder %v189, 0
        %v658 = vsub.s32 0, %v189
        %v659 = vsel %vm657, %v658, %v189
        %v660 = vmul.u32.u64.compose %v659, 2199023256
        %v661 = vextract.low.u32 %v660
        %v662 = vextract.high.u32 %v660
        %v663 = vshrl.u32 %v662, 9
        %v664 = vmul.u32 %v663, 1000
        %v665 = vsub.s32 %v659, %v664
        %v666 = vsub.s32 0, %v665
        %v667 = vsel %vm657, %v666, %v665
        %vm668 = vcmp.lt.s32.totalorder %v190, 0
        %v669 = vsub.s32 0, %v190
        %v670 = vsel %vm668, %v669, %v190
        %v671 = vmul.u32.u64.compose %v670, 2199023256
        %v672 = vextract.low.u32 %v671
        %v673 = vextract.high.u32 %v671
        %v674 = vshrl.u32 %v673, 9
        %v675 = vmul.u32 %v674, 1000
        %v676 = vsub.s32 %v670, %v675
        %v677 = vsub.s32 0, %v676
        %v678 = vsel %vm668, %v677, %v676
        %vm679 = vcmp.lt.s32.totalorder %v191, 0
        %v680 = vsub.s32 0, %v191
        %v681 = vsel %vm679, %v680, %v191
        %v682 = vmul.u32.u64.compose %v681, 2199023256
        %v683 = vextract.low.u32 %v682
        %v684 = vextract.high.u32 %v682
        %v685 = vshrl.u32 %v684, 9
        %v686 = vmul.u32 %v685, 1000
        %v687 = vsub.s32 %v681, %v686
        %v688 = vsub.s32 0, %v687
        %v689 = vsel %vm679, %v688, %v687
        %vm690 = vcmp.lt.s32.totalorder %v192, 0
        %v691 = vsub.s32 0, %v192
        %v692 = vsel %vm690, %v691, %v192
        %v693 = vmul.u32.u64.compose %v692, 2199023256
        %v694 = vextract.low.u32 %v693
        %v695 = vextract.high.u32 %v693
        %v696 = vshrl.u32 %v695, 9
        %v697 = vmul.u32 %v696, 1000
        %v698 = vsub.s32 %v692, %v697
        %v699 = vsub.s32 0, %v698
        %v700 = vsel %vm690, %v699, %v698
        %vm701 = vcmp.lt.s32.totalorder %v193, 0
        %v702 = vsub.s32 0, %v193
        %v703 = vsel %vm701, %v702, %v193
        %v704 = vmul.u32.u64.compose %v703, 2199023256
        %v705 = vextract.low.u32 %v704
        %v706 = vextract.high.u32 %v704
        %v707 = vshrl.u32 %v706, 9
        %v708 = vmul.u32 %v707, 1000
        %v709 = vsub.s32 %v703, %v708
        %v710 = vsub.s32 0, %v709
        %v711 = vsel %vm701, %v710, %v709
        %vm712 = vcmp.lt.s32.totalorder %v194, 0
        %v713 = vsub.s32 0, %v194
        %v714 = vsel %vm712, %v713, %v194
        %v715 = vmul.u32.u64.compose %v714, 2199023256
        %v716 = vextract.low.u32 %v715
        %v717 = vextract.high.u32 %v715
        %v718 = vshrl.u32 %v717, 9
        %v719 = vmul.u32 %v718, 1000
        %v720 = vsub.s32 %v714, %v719
        %v721 = vsub.s32 0, %v720
        %v722 = vsel %vm712, %v721, %v720
        %vm723 = vcmp.lt.s32.totalorder %v195, 0
        %v724 = vsub.s32 0, %v195
        %v725 = vsel %vm723, %v724, %v195
        %v726 = vmul.u32.u64.compose %v725, 2199023256
        %v727 = vextract.low.u32 %v726
        %v728 = vextract.high.u32 %v726
        %v729 = vshrl.u32 %v728, 9
        %v730 = vmul.u32 %v729, 1000
        %v731 = vsub.s32 %v725, %v730
        %v732 = vsub.s32 0, %v731
        %v733 = vsel %vm723, %v732, %v731
        %vm734 = vcmp.lt.s32.totalorder %v196, 0
        %v735 = vsub.s32 0, %v196
        %v736 = vsel %vm734, %v735, %v196
        %v737 = vmul.u32.u64.compose %v736, 2199023256
        %v738 = vextract.low.u32 %v737
        %v739 = vextract.high.u32 %v737
        %v740 = vshrl.u32 %v739, 9
        %v741 = vmul.u32 %v740, 1000
        %v742 = vsub.s32 %v736, %v741
        %v743 = vsub.s32 0, %v742
        %v744 = vsel %vm734, %v743, %v742
        %vm745 = vcmp.lt.s32.totalorder %v197, 0
        %v746 = vsub.s32 0, %v197
        %v747 = vsel %vm745, %v746, %v197
        %v748 = vmul.u32.u64.compose %v747, 2199023256
        %v749 = vextract.low.u32 %v748
        %v750 = vextract.high.u32 %v748
        %v751 = vshrl.u32 %v750, 9
        %v752 = vmul.u32 %v751, 1000
        %v753 = vsub.s32 %v747, %v752
        %v754 = vsub.s32 0, %v753
        %v755 = vsel %vm745, %v754, %v753
        %vm756 = vcmp.lt.s32.totalorder %v198, 0
        %v757 = vsub.s32 0, %v198
        %v758 = vsel %vm756, %v757, %v198
        %v759 = vmul.u32.u64.compose %v758, 2199023256
        %v760 = vextract.low.u32 %v759
        %v761 = vextract.high.u32 %v759
        %v762 = vshrl.u32 %v761, 9
        %v763 = vmul.u32 %v762, 1000
        %v764 = vsub.s32 %v758, %v763
        %v765 = vsub.s32 0, %v764
        %v766 = vsel %vm756, %v765, %v764
        %vm767 = vcmp.lt.s32.totalorder %v199, 0
        %v768 = vsub.s32 0, %v199
        %v769 = vsel %vm767, %v768, %v199
        %v770 = vmul.u32.u64.compose %v769, 2199023256
        %v771 = vextract.low.u32 %v770
        %v772 = vextract.high.u32 %v770
        %v773 = vshrl.u32 %v772, 9
        %v774 = vmul.u32 %v773, 1000
        %v775 = vsub.s32 %v769, %v774
        %v776 = vsub.s32 0, %v775
        %v777 = vsel %vm767, %v776, %v775
        %vm778 = vcmp.lt.s32.totalorder %v200, 0
        %v779 = vsub.s32 0, %v200
        %v780 = vsel %vm778, %v779, %v200
        %v781 = vmul.u32.u64.compose %v780, 2199023256
        %v782 = vextract.low.u32 %v781
        %v783 = vextract.high.u32 %v781
        %v784 = vshrl.u32 %v783, 9
        %v785 = vmul.u32 %v784, 1000
        %v786 = vsub.s32 %v780, %v785
        %v787 = vsub.s32 0, %v786
        %v788 = vsel %vm778, %v787, %v786
        %vm789 = vcmp.lt.s32.totalorder %v201, 0
        %v790 = vsub.s32 0, %v201
        %v791 = vsel %vm789, %v790, %v201
        %v792 = vmul.u32.u64.compose %v791, 2199023256
        %v793 = vextract.low.u32 %v792
        %v794 = vextract.high.u32 %v792
        %v795 = vshrl.u32 %v794, 9
        %v796 = vmul.u32 %v795, 1000
        %v797 = vsub.s32 %v791, %v796
        %v798 = vsub.s32 0, %v797
        %v799 = vsel %vm789, %v798, %v797
        %vm800 = vcmp.lt.s32.totalorder %v202, 0
        %v801 = vsub.s32 0, %v202
        %v802 = vsel %vm800, %v801, %v202
        %v803 = vmul.u32.u64.compose %v802, 2199023256
        %v804 = vextract.low.u32 %v803
        %v805 = vextract.high.u32 %v803
        %v806 = vshrl.u32 %v805, 9
        %v807 = vmul.u32 %v806, 1000
        %v808 = vsub.s32 %v802, %v807
        %v809 = vsub.s32 0, %v808
        %v810 = vsel %vm800, %v809, %v808
        %vm811 = vcmp.lt.s32.totalorder %v203, 0
        %v812 = vsub.s32 0, %v203
        %v813 = vsel %vm811, %v812, %v203
        %v814 = vmul.u32.u64.compose %v813, 2199023256
        %v815 = vextract.low.u32 %v814
        %v816 = vextract.high.u32 %v814
        %v817 = vshrl.u32 %v816, 9
        %v818 = vmul.u32 %v817, 1000
        %v819 = vsub.s32 %v813, %v818
        %v820 = vsub.s32 0, %v819
        %v821 = vsel %vm811, %v820, %v819
        %vm822 = vcmp.lt.s32.totalorder %v204, 0
        %v823 = vsub.s32 0, %v204
        %v824 = vsel %vm822, %v823, %v204
        %v825 = vmul.u32.u64.compose %v824, 2199023256
        %v826 = vextract.low.u32 %v825
        %v827 = vextract.high.u32 %v825
        %v828 = vshrl.u32 %v827, 9
        %v829 = vmul.u32 %v828, 1000
        %v830 = vsub.s32 %v824, %v829
        %v831 = vsub.s32 0, %v830
        %v832 = vsel %vm822, %v831, %v830
        %vm833 = vcmp.lt.s32.totalorder %v205, 0
        %v834 = vsub.s32 0, %v205
        %v835 = vsel %vm833, %v834, %v205
        %v836 = vmul.u32.u64.compose %v835, 2199023256
        %v837 = vextract.low.u32 %v836
        %v838 = vextract.high.u32 %v836
        %v839 = vshrl.u32 %v838, 9
        %v840 = vmul.u32 %v839, 1000
        %v841 = vsub.s32 %v835, %v840
        %v842 = vsub.s32 0, %v841
        %v843 = vsel %vm833, %v842, %v841
        %vm844 = vcmp.lt.s32.totalorder %v206, 0
        %v845 = vsub.s32 0, %v206
        %v846 = vsel %vm844, %v845, %v206
        %v847 = vmul.u32.u64.compose %v846, 2199023256
        %v848 = vextract.low.u32 %v847
        %v849 = vextract.high.u32 %v847
        %v850 = vshrl.u32 %v849, 9
        %v851 = vmul.u32 %v850, 1000
        %v852 = vsub.s32 %v846, %v851
        %v853 = vsub.s32 0, %v852
        %v854 = vsel %vm844, %v853, %v852
        %vm855 = vcmp.lt.s32.totalorder %v207, 0
        %v856 = vsub.s32 0, %v207
        %v857 = vsel %vm855, %v856, %v207
        %v858 = vmul.u32.u64.compose %v857, 2199023256
        %v859 = vextract.low.u32 %v858
        %v860 = vextract.high.u32 %v858
        %v861 = vshrl.u32 %v860, 9
        %v862 = vmul.u32 %v861, 1000
        %v863 = vsub.s32 %v857, %v862
        %v864 = vsub.s32 0, %v863
        %v865 = vsel %vm855, %v864, %v863
        %vm866 = vcmp.lt.s32.totalorder %v208, 0
        %v867 = vsub.s32 0, %v208
        %v868 = vsel %vm866, %v867, %v208
        %v869 = vmul.u32.u64.compose %v868, 2199023256
        %v870 = vextract.low.u32 %v869
        %v871 = vextract.high.u32 %v869
        %v872 = vshrl.u32 %v871, 9
        %v873 = vmul.u32 %v872, 1000
        %v874 = vsub.s32 %v868, %v873
        %v875 = vsub.s32 0, %v874
        %v876 = vsel %vm866, %v875, %v874
        %vm877 = vcmp.lt.s32.totalorder %v209, 0
        %v878 = vsub.s32 0, %v209
        %v879 = vsel %vm877, %v878, %v209
        %v880 = vmul.u32.u64.compose %v879, 2199023256
        %v881 = vextract.low.u32 %v880
        %v882 = vextract.high.u32 %v880
        %v883 = vshrl.u32 %v882, 9
        %v884 = vmul.u32 %v883, 1000
        %v885 = vsub.s32 %v879, %v884
        %v886 = vsub.s32 0, %v885
        %v887 = vsel %vm877, %v886, %v885
        %vm888 = vcmp.lt.s32.totalorder %v210, 0
        %v889 = vsub.s32 0, %v210
        %v890 = vsel %vm888, %v889, %v210
        %v891 = vmul.u32.u64.compose %v890, 2199023256
        %v892 = vextract.low.u32 %v891
        %v893 = vextract.high.u32 %v891
        %v894 = vshrl.u32 %v893, 9
        %v895 = vmul.u32 %v894, 1000
        %v896 = vsub.s32 %v890, %v895
        %v897 = vsub.s32 0, %v896
        %v898 = vsel %vm888, %v897, %v896
        %vm899 = vcmp.lt.s32.totalorder %v211, 0
        %v900 = vsub.s32 0, %v211
        %v901 = vsel %vm899, %v900, %v211
        %v902 = vmul.u32.u64.compose %v901, 2199023256
        %v903 = vextract.low.u32 %v902
        %v904 = vextract.high.u32 %v902
        %v905 = vshrl.u32 %v904, 9
        %v906 = vmul.u32 %v905, 1000
        %v907 = vsub.s32 %v901, %v906
        %v908 = vsub.s32 0, %v907
        %v909 = vsel %vm899, %v908, %v907
        %vm910 = vcmp.lt.s32.totalorder %v212, 0
        %v911 = vsub.s32 0, %v212
        %v912 = vsel %vm910, %v911, %v212
        %v913 = vmul.u32.u64.compose %v912, 2199023256
        %v914 = vextract.low.u32 %v913
        %v915 = vextract.high.u32 %v913
        %v916 = vshrl.u32 %v915, 9
        %v917 = vmul.u32 %v916, 1000
        %v918 = vsub.s32 %v912, %v917
        %v919 = vsub.s32 0, %v918
        %v920 = vsel %vm910, %v919, %v918
        %vm921 = vcmp.lt.s32.totalorder %v213, 0
        %v922 = vsub.s32 0, %v213
        %v923 = vsel %vm921, %v922, %v213
        %v924 = vmul.u32.u64.compose %v923, 2199023256
        %v925 = vextract.low.u32 %v924
        %v926 = vextract.high.u32 %v924
        %v927 = vshrl.u32 %v926, 9
        %v928 = vmul.u32 %v927, 1000
        %v929 = vsub.s32 %v923, %v928
        %v930 = vsub.s32 0, %v929
        %v931 = vsel %vm921, %v930, %v929
        %vm932 = vcmp.lt.s32.totalorder %v214, 0
        %v933 = vsub.s32 0, %v214
        %v934 = vsel %vm932, %v933, %v214
        %v935 = vmul.u32.u64.compose %v934, 2199023256
        %v936 = vextract.low.u32 %v935
        %v937 = vextract.high.u32 %v935
        %v938 = vshrl.u32 %v937, 9
        %v939 = vmul.u32 %v938, 1000
        %v940 = vsub.s32 %v934, %v939
        %v941 = vsub.s32 0, %v940
        %v942 = vsel %vm932, %v941, %v940
        %vm943 = vcmp.lt.s32.totalorder %v215, 0
        %v944 = vsub.s32 0, %v215
        %v945 = vsel %vm943, %v944, %v215
        %v946 = vmul.u32.u64.compose %v945, 2199023256
        %v947 = vextract.low.u32 %v946
        %v948 = vextract.high.u32 %v946
        %v949 = vshrl.u32 %v948, 9
        %v950 = vmul.u32 %v949, 1000
        %v951 = vsub.s32 %v945, %v950
        %v952 = vsub.s32 0, %v951
        %v953 = vsel %vm943, %v952, %v951
        %vm954 = vcmp.lt.s32.totalorder %v216, 0
        %v955 = vsub.s32 0, %v216
        %v956 = vsel %vm954, %v955, %v216
        %v957 = vmul.u32.u64.compose %v956, 2199023256
        %v958 = vextract.low.u32 %v957
        %v959 = vextract.high.u32 %v957
        %v960 = vshrl.u32 %v959, 9
        %v961 = vmul.u32 %v960, 1000
        %v962 = vsub.s32 %v956, %v961
        %v963 = vsub.s32 0, %v962
        %v964 = vsel %vm954, %v963, %v962
        %vm965 = vcmp.lt.s32.totalorder %v217, 0
        %v966 = vsub.s32 0, %v217
        %v967 = vsel %vm965, %v966, %v217
        %v968 = vmul.u32.u64.compose %v967, 2199023256
        %v969 = vextract.low.u32 %v968
        %v970 = vextract.high.u32 %v968
        %v971 = vshrl.u32 %v970, 9
        %v972 = vmul.u32 %v971, 1000
        %v973 = vsub.s32 %v967, %v972
        %v974 = vsub.s32 0, %v973
        %v975 = vsel %vm965, %v974, %v973
        %vm976 = vcmp.lt.s32.totalorder %v218, 0
        %v977 = vsub.s32 0, %v218
        %v978 = vsel %vm976, %v977, %v218
        %v979 = vmul.u32.u64.compose %v978, 2199023256
        %v980 = vextract.low.u32 %v979
        %v981 = vextract.high.u32 %v979
        %v982 = vshrl.u32 %v981, 9
        %v983 = vmul.u32 %v982, 1000
        %v984 = vsub.s32 %v978, %v983
        %v985 = vsub.s32 0, %v984
        %v986 = vsel %vm976, %v985, %v984
        %vm987 = vcmp.lt.s32.totalorder %v219, 0
        %v988 = vsub.s32 0, %v219
        %v989 = vsel %vm987, %v988, %v219
        %v990 = vmul.u32.u64.compose %v989, 2199023256
        %v991 = vextract.low.u32 %v990
        %v992 = vextract.high.u32 %v990
        %v993 = vshrl.u32 %v992, 9
        %v994 = vmul.u32 %v993, 1000
        %v995 = vsub.s32 %v989, %v994
        %v996 = vsub.s32 0, %v995
        %v997 = vsel %vm987, %v996, %v995
        %vm998 = vcmp.lt.s32.totalorder %v220, 0
        %v999 = vsub.s32 0, %v220
        %v1000 = vsel %vm998, %v999, %v220
        %v1001 = vmul.u32.u64.compose %v1000, 2199023256
        %v1002 = vextract.low.u32 %v1001
        %v1003 = vextract.high.u32 %v1001
        %v1004 = vshrl.u32 %v1003, 9
        %v1005 = vmul.u32 %v1004, 1000
        %v1006 = vsub.s32 %v1000, %v1005
        %v1007 = vsub.s32 0, %v1006
        %v1008 = vsel %vm998, %v1007, %v1006
        %vm1009 = vcmp.lt.s32.totalorder %v221, 0
        %v1010 = vsub.s32 0, %v221
        %v1011 = vsel %vm1009, %v1010, %v221
        %v1012 = vmul.u32.u64.compose %v1011, 2199023256
        %v1013 = vextract.low.u32 %v1012
        %v1014 = vextract.high.u32 %v1012
        %v1015 = vshrl.u32 %v1014, 9
        %v1016 = vmul.u32 %v1015, 1000
        %v1017 = vsub.s32 %v1011, %v1016
        %v1018 = vsub.s32 0, %v1017
        %v1019 = vsel %vm1009, %v1018, %v1017
        %vm1020 = vcmp.lt.s32.totalorder %v222, 0
        %v1021 = vsub.s32 0, %v222
        %v1022 = vsel %vm1020, %v1021, %v222
        %v1023 = vmul.u32.u64.compose %v1022, 2199023256
        %v1024 = vextract.low.u32 %v1023
        %v1025 = vextract.high.u32 %v1023
        %v1026 = vshrl.u32 %v1025, 9
        %v1027 = vmul.u32 %v1026, 1000
        %v1028 = vsub.s32 %v1022, %v1027
        %v1029 = vsub.s32 0, %v1028
        %v1030 = vsel %vm1020, %v1029, %v1028
        %vm1031 = vcmp.lt.s32.totalorder %v223, 0
        %v1032 = vsub.s32 0, %v223
        %v1033 = vsel %vm1031, %v1032, %v223
        %v1034 = vmul.u32.u64.compose %v1033, 2199023256
        %v1035 = vextract.low.u32 %v1034
        %v1036 = vextract.high.u32 %v1034
        %v1037 = vshrl.u32 %v1036, 9
        %v1038 = vmul.u32 %v1037, 1000
        %v1039 = vsub.s32 %v1033, %v1038
        %v1040 = vsub.s32 0, %v1039
        %v1041 = vsel %vm1031, %v1040, %v1039
        %vm1042 = vcmp.lt.s32.totalorder %v224, 0
        %v1043 = vsub.s32 0, %v224
        %v1044 = vsel %vm1042, %v1043, %v224
        %v1045 = vmul.u32.u64.compose %v1044, 2199023256
        %v1046 = vextract.low.u32 %v1045
        %v1047 = vextract.high.u32 %v1045
        %v1048 = vshrl.u32 %v1047, 9
        %v1049 = vmul.u32 %v1048, 1000
        %v1050 = vsub.s32 %v1044, %v1049
        %v1051 = vsub.s32 0, %v1050
        %v1052 = vsel %vm1042, %v1051, %v1050
        %vm1053 = vcmp.lt.s32.totalorder %v225, 0
        %v1054 = vsub.s32 0, %v225
        %v1055 = vsel %vm1053, %v1054, %v225
        %v1056 = vmul.u32.u64.compose %v1055, 2199023256
        %v1057 = vextract.low.u32 %v1056
        %v1058 = vextract.high.u32 %v1056
        %v1059 = vshrl.u32 %v1058, 9
        %v1060 = vmul.u32 %v1059, 1000
        %v1061 = vsub.s32 %v1055, %v1060
        %v1062 = vsub.s32 0, %v1061
        %v1063 = vsel %vm1053, %v1062, %v1061
        %vm1064 = vcmp.lt.s32.totalorder %v226, 0
        %v1065 = vsub.s32 0, %v226
        %v1066 = vsel %vm1064, %v1065, %v226
        %v1067 = vmul.u32.u64.compose %v1066, 2199023256
        %v1068 = vextract.low.u32 %v1067
        %v1069 = vextract.high.u32 %v1067
        %v1070 = vshrl.u32 %v1069, 9
        %v1071 = vmul.u32 %v1070, 1000
        %v1072 = vsub.s32 %v1066, %v1071
        %v1073 = vsub.s32 0, %v1072
        %v1074 = vsel %vm1064, %v1073, %v1072
        %vm1075 = vcmp.lt.s32.totalorder %v227, 0
        %v1076 = vsub.s32 0, %v227
        %v1077 = vsel %vm1075, %v1076, %v227
        %v1078 = vmul.u32.u64.compose %v1077, 2199023256
        %v1079 = vextract.low.u32 %v1078
        %v1080 = vextract.high.u32 %v1078
        %v1081 = vshrl.u32 %v1080, 9
        %v1082 = vmul.u32 %v1081, 1000
        %v1083 = vsub.s32 %v1077, %v1082
        %v1084 = vsub.s32 0, %v1083
        %v1085 = vsel %vm1075, %v1084, %v1083
        %vm1086 = vcmp.lt.s32.totalorder %v228, 0
        %v1087 = vsub.s32 0, %v228
        %v1088 = vsel %vm1086, %v1087, %v228
        %v1089 = vmul.u32.u64.compose %v1088, 2199023256
        %v1090 = vextract.low.u32 %v1089
        %v1091 = vextract.high.u32 %v1089
        %v1092 = vshrl.u32 %v1091, 9
        %v1093 = vmul.u32 %v1092, 1000
        %v1094 = vsub.s32 %v1088, %v1093
        %v1095 = vsub.s32 0, %v1094
        %v1096 = vsel %vm1086, %v1095, %v1094
        %vm1097 = vcmp.lt.s32.totalorder %v229, 0
        %v1098 = vsub.s32 0, %v229
        %v1099 = vsel %vm1097, %v1098, %v229
        %v1100 = vmul.u32.u64.compose %v1099, 2199023256
        %v1101 = vextract.low.u32 %v1100
        %v1102 = vextract.high.u32 %v1100
        %v1103 = vshrl.u32 %v1102, 9
        %v1104 = vmul.u32 %v1103, 1000
        %v1105 = vsub.s32 %v1099, %v1104
        %v1106 = vsub.s32 0, %v1105
        %v1107 = vsel %vm1097, %v1106, %v1105
        %vm1108 = vcmp.lt.s32.totalorder %v230, 0
        %v1109 = vsub.s32 0, %v230
        %v1110 = vsel %vm1108, %v1109, %v230
        %v1111 = vmul.u32.u64.compose %v1110, 2199023256
        %v1112 = vextract.low.u32 %v1111
        %v1113 = vextract.high.u32 %v1111
        %v1114 = vshrl.u32 %v1113, 9
        %v1115 = vmul.u32 %v1114, 1000
        %v1116 = vsub.s32 %v1110, %v1115
        %v1117 = vsub.s32 0, %v1116
        %v1118 = vsel %vm1108, %v1117, %v1116
        %vm1119 = vcmp.lt.s32.totalorder %v231, 0
        %v1120 = vsub.s32 0, %v231
        %v1121 = vsel %vm1119, %v1120, %v231
        %v1122 = vmul.u32.u64.compose %v1121, 2199023256
        %v1123 = vextract.low.u32 %v1122
        %v1124 = vextract.high.u32 %v1122
        %v1125 = vshrl.u32 %v1124, 9
        %v1126 = vmul.u32 %v1125, 1000
        %v1127 = vsub.s32 %v1121, %v1126
        %v1128 = vsub.s32 0, %v1127
        %v1129 = vsel %vm1119, %v1128, %v1127
        %vm1130 = vcmp.lt.s32.totalorder %v232, 0
        %v1131 = vsub.s32 0, %v232
        %v1132 = vsel %vm1130, %v1131, %v232
        %v1133 = vmul.u32.u64.compose %v1132, 2199023256
        %v1134 = vextract.low.u32 %v1133
        %v1135 = vextract.high.u32 %v1133
        %v1136 = vshrl.u32 %v1135, 9
        %v1137 = vmul.u32 %v1136, 1000
        %v1138 = vsub.s32 %v1132, %v1137
        %v1139 = vsub.s32 0, %v1138
        %v1140 = vsel %vm1130, %v1139, %v1138
        %vm1141 = vcmp.lt.s32.totalorder %v233, 0
        %v1142 = vsub.s32 0, %v233
        %v1143 = vsel %vm1141, %v1142, %v233
        %v1144 = vmul.u32.u64.compose %v1143, 2199023256
        %v1145 = vextract.low.u32 %v1144
        %v1146 = vextract.high.u32 %v1144
        %v1147 = vshrl.u32 %v1146, 9
        %v1148 = vmul.u32 %v1147, 1000
        %v1149 = vsub.s32 %v1143, %v1148
        %v1150 = vsub.s32 0, %v1149
        %v1151 = vsel %vm1141, %v1150, %v1149
        %vm1152 = vcmp.lt.s32.totalorder %v234, 0
        %v1153 = vsub.s32 0, %v234
        %v1154 = vsel %vm1152, %v1153, %v234
        %v1155 = vmul.u32.u64.compose %v1154, 2199023256
        %v1156 = vextract.low.u32 %v1155
        %v1157 = vextract.high.u32 %v1155
        %v1158 = vshrl.u32 %v1157, 9
        %v1159 = vmul.u32 %v1158, 1000
        %v1160 = vsub.s32 %v1154, %v1159
        %v1161 = vsub.s32 0, %v1160
        %v1162 = vsel %vm1152, %v1161, %v1160
        %vm1163 = vcmp.lt.s32.totalorder %v235, 0
        %v1164 = vsub.s32 0, %v235
        %v1165 = vsel %vm1163, %v1164, %v235
        %v1166 = vmul.u32.u64.compose %v1165, 2199023256
        %v1167 = vextract.low.u32 %v1166
        %v1168 = vextract.high.u32 %v1166
        %v1169 = vshrl.u32 %v1168, 9
        %v1170 = vmul.u32 %v1169, 1000
        %v1171 = vsub.s32 %v1165, %v1170
        %v1172 = vsub.s32 0, %v1171
        %v1173 = vsel %vm1163, %v1172, %v1171
        %vm1174 = vcmp.lt.s32.totalorder %v236, 0
        %v1175 = vsub.s32 0, %v236
        %v1176 = vsel %vm1174, %v1175, %v236
        %v1177 = vmul.u32.u64.compose %v1176, 2199023256
        %v1178 = vextract.low.u32 %v1177
        %v1179 = vextract.high.u32 %v1177
        %v1180 = vshrl.u32 %v1179, 9
        %v1181 = vmul.u32 %v1180, 1000
        %v1182 = vsub.s32 %v1176, %v1181
        %v1183 = vsub.s32 0, %v1182
        %v1184 = vsel %vm1174, %v1183, %v1182
        %vm1185 = vcmp.lt.s32.totalorder %v237, 0
        %v1186 = vsub.s32 0, %v237
        %v1187 = vsel %vm1185, %v1186, %v237
        %v1188 = vmul.u32.u64.compose %v1187, 2199023256
        %v1189 = vextract.low.u32 %v1188
        %v1190 = vextract.high.u32 %v1188
        %v1191 = vshrl.u32 %v1190, 9
        %v1192 = vmul.u32 %v1191, 1000
        %v1193 = vsub.s32 %v1187, %v1192
        %v1194 = vsub.s32 0, %v1193
        %v1195 = vsel %vm1185, %v1194, %v1193
        %vm1196 = vcmp.lt.s32.totalorder %v238, 0
        %v1197 = vsub.s32 0, %v238
        %v1198 = vsel %vm1196, %v1197, %v238
        %v1199 = vmul.u32.u64.compose %v1198, 2199023256
        %v1200 = vextract.low.u32 %v1199
        %v1201 = vextract.high.u32 %v1199
        %v1202 = vshrl.u32 %v1201, 9
        %v1203 = vmul.u32 %v1202, 1000
        %v1204 = vsub.s32 %v1198, %v1203
        %v1205 = vsub.s32 0, %v1204
        %v1206 = vsel %vm1196, %v1205, %v1204
        %vm1207 = vcmp.lt.s32.totalorder %v239, 0
        %v1208 = vsub.s32 0, %v239
        %v1209 = vsel %vm1207, %v1208, %v239
        %v1210 = vmul.u32.u64.compose %v1209, 2199023256
        %v1211 = vextract.low.u32 %v1210
        %v1212 = vextract.high.u32 %v1210
        %v1213 = vshrl.u32 %v1212, 9
        %v1214 = vmul.u32 %v1213, 1000
        %v1215 = vsub.s32 %v1209, %v1214
        %v1216 = vsub.s32 0, %v1215
        %v1217 = vsel %vm1207, %v1216, %v1215
        %vm1218 = vcmp.lt.s32.totalorder %v240, 0
        %v1219 = vsub.s32 0, %v240
        %v1220 = vsel %vm1218, %v1219, %v240
        %v1221 = vmul.u32.u64.compose %v1220, 2199023256
        %v1222 = vextract.low.u32 %v1221
        %v1223 = vextract.high.u32 %v1221
        %v1224 = vshrl.u32 %v1223, 9
        %v1225 = vmul.u32 %v1224, 1000
        %v1226 = vsub.s32 %v1220, %v1225
        %v1227 = vsub.s32 0, %v1226
        %v1228 = vsel %vm1218, %v1227, %v1226
        %vm1229 = vcmp.lt.s32.totalorder %v241, 0
        %v1230 = vsub.s32 0, %v241
        %v1231 = vsel %vm1229, %v1230, %v241
        %v1232 = vmul.u32.u64.compose %v1231, 2199023256
        %v1233 = vextract.low.u32 %v1232
        %v1234 = vextract.high.u32 %v1232
        %v1235 = vshrl.u32 %v1234, 9
        %v1236 = vmul.u32 %v1235, 1000
        %v1237 = vsub.s32 %v1231, %v1236
        %v1238 = vsub.s32 0, %v1237
        %v1239 = vsel %vm1229, %v1238, %v1237
        %vm1240 = vcmp.lt.s32.totalorder %v242, 0
        %v1241 = vsub.s32 0, %v242
        %v1242 = vsel %vm1240, %v1241, %v242
        %v1243 = vmul.u32.u64.compose %v1242, 2199023256
        %v1244 = vextract.low.u32 %v1243
        %v1245 = vextract.high.u32 %v1243
        %v1246 = vshrl.u32 %v1245, 9
        %v1247 = vmul.u32 %v1246, 1000
        %v1248 = vsub.s32 %v1242, %v1247
        %v1249 = vsub.s32 0, %v1248
        %v1250 = vsel %vm1240, %v1249, %v1248
        %vm1251 = vcmp.lt.s32.totalorder %v243, 0
        %v1252 = vsub.s32 0, %v243
        %v1253 = vsel %vm1251, %v1252, %v243
        %v1254 = vmul.u32.u64.compose %v1253, 2199023256
        %v1255 = vextract.low.u32 %v1254
        %v1256 = vextract.high.u32 %v1254
        %v1257 = vshrl.u32 %v1256, 9
        %v1258 = vmul.u32 %v1257, 1000
        %v1259 = vsub.s32 %v1253, %v1258
        %v1260 = vsub.s32 0, %v1259
        %v1261 = vsel %vm1251, %v1260, %v1259
        %vm1262 = vcmp.lt.s32.totalorder %v244, 0
        %v1263 = vsub.s32 0, %v244
        %v1264 = vsel %vm1262, %v1263, %v244
        %v1265 = vmul.u32.u64.compose %v1264, 2199023256
        %v1266 = vextract.low.u32 %v1265
        %v1267 = vextract.high.u32 %v1265
        %v1268 = vshrl.u32 %v1267, 9
        %v1269 = vmul.u32 %v1268, 1000
        %v1270 = vsub.s32 %v1264, %v1269
        %v1271 = vsub.s32 0, %v1270
        %v1272 = vsel %vm1262, %v1271, %v1270
        %vm1273 = vcmp.lt.s32.totalorder %v245, 0
        %v1274 = vsub.s32 0, %v245
        %v1275 = vsel %vm1273, %v1274, %v245
        %v1276 = vmul.u32.u64.compose %v1275, 2199023256
        %v1277 = vextract.low.u32 %v1276
        %v1278 = vextract.high.u32 %v1276
        %v1279 = vshrl.u32 %v1278, 9
        %v1280 = vmul.u32 %v1279, 1000
        %v1281 = vsub.s32 %v1275, %v1280
        %v1282 = vsub.s32 0, %v1281
        %v1283 = vsel %vm1273, %v1282, %v1281
        %vm1284 = vcmp.lt.s32.totalorder %v246, 0
        %v1285 = vsub.s32 0, %v246
        %v1286 = vsel %vm1284, %v1285, %v246
        %v1287 = vmul.u32.u64.compose %v1286, 2199023256
        %v1288 = vextract.low.u32 %v1287
        %v1289 = vextract.high.u32 %v1287
        %v1290 = vshrl.u32 %v1289, 9
        %v1291 = vmul.u32 %v1290, 1000
        %v1292 = vsub.s32 %v1286, %v1291
        %v1293 = vsub.s32 0, %v1292
        %v1294 = vsel %vm1284, %v1293, %v1292
        %vm1295 = vcmp.lt.s32.totalorder %v247, 0
        %v1296 = vsub.s32 0, %v247
        %v1297 = vsel %vm1295, %v1296, %v247
        %v1298 = vmul.u32.u64.compose %v1297, 2199023256
        %v1299 = vextract.low.u32 %v1298
        %v1300 = vextract.high.u32 %v1298
        %v1301 = vshrl.u32 %v1300, 9
        %v1302 = vmul.u32 %v1301, 1000
        %v1303 = vsub.s32 %v1297, %v1302
        %v1304 = vsub.s32 0, %v1303
        %v1305 = vsel %vm1295, %v1304, %v1303
        %vm1306 = vcmp.lt.s32.totalorder %v248, 0
        %v1307 = vsub.s32 0, %v248
        %v1308 = vsel %vm1306, %v1307, %v248
        %v1309 = vmul.u32.u64.compose %v1308, 2199023256
        %v1310 = vextract.low.u32 %v1309
        %v1311 = vextract.high.u32 %v1309
        %v1312 = vshrl.u32 %v1311, 9
        %v1313 = vmul.u32 %v1312, 1000
        %v1314 = vsub.s32 %v1308, %v1313
        %v1315 = vsub.s32 0, %v1314
        %v1316 = vsel %vm1306, %v1315, %v1314
        %vm1317 = vcmp.lt.s32.totalorder %v249, 0
        %v1318 = vsub.s32 0, %v249
        %v1319 = vsel %vm1317, %v1318, %v249
        %v1320 = vmul.u32.u64.compose %v1319, 2199023256
        %v1321 = vextract.low.u32 %v1320
        %v1322 = vextract.high.u32 %v1320
        %v1323 = vshrl.u32 %v1322, 9
        %v1324 = vmul.u32 %v1323, 1000
        %v1325 = vsub.s32 %v1319, %v1324
        %v1326 = vsub.s32 0, %v1325
        %v1327 = vsel %vm1317, %v1326, %v1325
        %vm1328 = vcmp.lt.s32.totalorder %v250, 0
        %v1329 = vsub.s32 0, %v250
        %v1330 = vsel %vm1328, %v1329, %v250
        %v1331 = vmul.u32.u64.compose %v1330, 2199023256
        %v1332 = vextract.low.u32 %v1331
        %v1333 = vextract.high.u32 %v1331
        %v1334 = vshrl.u32 %v1333, 9
        %v1335 = vmul.u32 %v1334, 1000
        %v1336 = vsub.s32 %v1330, %v1335
        %v1337 = vsub.s32 0, %v1336
        %v1338 = vsel %vm1328, %v1337, %v1336
        %vm1339 = vcmp.lt.s32.totalorder %v251, 0
        %v1340 = vsub.s32 0, %v251
        %v1341 = vsel %vm1339, %v1340, %v251
        %v1342 = vmul.u32.u64.compose %v1341, 2199023256
        %v1343 = vextract.low.u32 %v1342
        %v1344 = vextract.high.u32 %v1342
        %v1345 = vshrl.u32 %v1344, 9
        %v1346 = vmul.u32 %v1345, 1000
        %v1347 = vsub.s32 %v1341, %v1346
        %v1348 = vsub.s32 0, %v1347
        %v1349 = vsel %vm1339, %v1348, %v1347
        %vm1350 = vcmp.lt.s32.totalorder %v252, 0
        %v1351 = vsub.s32 0, %v252
        %v1352 = vsel %vm1350, %v1351, %v252
        %v1353 = vmul.u32.u64.compose %v1352, 2199023256
        %v1354 = vextract.low.u32 %v1353
        %v1355 = vextract.high.u32 %v1353
        %v1356 = vshrl.u32 %v1355, 9
        %v1357 = vmul.u32 %v1356, 1000
        %v1358 = vsub.s32 %v1352, %v1357
        %v1359 = vsub.s32 0, %v1358
        %v1360 = vsel %vm1350, %v1359, %v1358
        %vm1361 = vcmp.lt.s32.totalorder %v253, 0
        %v1362 = vsub.s32 0, %v253
        %v1363 = vsel %vm1361, %v1362, %v253
        %v1364 = vmul.u32.u64.compose %v1363, 2199023256
        %v1365 = vextract.low.u32 %v1364
        %v1366 = vextract.high.u32 %v1364
        %v1367 = vshrl.u32 %v1366, 9
        %v1368 = vmul.u32 %v1367, 1000
        %v1369 = vsub.s32 %v1363, %v1368
        %v1370 = vsub.s32 0, %v1369
        %v1371 = vsel %vm1361, %v1370, %v1369
        %vm1372 = vcmp.lt.s32.totalorder %v254, 0
        %v1373 = vsub.s32 0, %v254
        %v1374 = vsel %vm1372, %v1373, %v254
        %v1375 = vmul.u32.u64.compose %v1374, 2199023256
        %v1376 = vextract.low.u32 %v1375
        %v1377 = vextract.high.u32 %v1375
        %v1378 = vshrl.u32 %v1377, 9
        %v1379 = vmul.u32 %v1378, 1000
        %v1380 = vsub.s32 %v1374, %v1379
        %v1381 = vsub.s32 0, %v1380
        %v1382 = vsel %vm1372, %v1381, %v1380
        %vm1383 = vcmp.lt.s32.totalorder %v255, 0
        %v1384 = vsub.s32 0, %v255
        %v1385 = vsel %vm1383, %v1384, %v255
        %v1386 = vmul.u32.u64.compose %v1385, 2199023256
        %v1387 = vextract.low.u32 %v1386
        %v1388 = vextract.high.u32 %v1386
        %v1389 = vshrl.u32 %v1388, 9
        %v1390 = vmul.u32 %v1389, 1000
        %v1391 = vsub.s32 %v1385, %v1390
        %v1392 = vsub.s32 0, %v1391
        %v1393 = vsel %vm1383, %v1392, %v1391
        %vm1394 = vcmp.lt.s32.totalorder %v256, 0
        %v1395 = vsub.s32 0, %v256
        %v1396 = vsel %vm1394, %v1395, %v256
        %v1397 = vmul.u32.u64.compose %v1396, 2199023256
        %v1398 = vextract.low.u32 %v1397
        %v1399 = vextract.high.u32 %v1397
        %v1400 = vshrl.u32 %v1399, 9
        %v1401 = vmul.u32 %v1400, 1000
        %v1402 = vsub.s32 %v1396, %v1401
        %v1403 = vsub.s32 0, %v1402
        %v1404 = vsel %vm1394, %v1403, %v1402
        %vm1405 = vcmp.lt.s32.totalorder %v257, 0
        %v1406 = vsub.s32 0, %v257
        %v1407 = vsel %vm1405, %v1406, %v257
        %v1408 = vmul.u32.u64.compose %v1407, 2199023256
        %v1409 = vextract.low.u32 %v1408
        %v1410 = vextract.high.u32 %v1408
        %v1411 = vshrl.u32 %v1410, 9
        %v1412 = vmul.u32 %v1411, 1000
        %v1413 = vsub.s32 %v1407, %v1412
        %v1414 = vsub.s32 0, %v1413
        %v1415 = vsel %vm1405, %v1414, %v1413
        %vm1416 = vcmp.lt.s32.totalorder %v258, 0
        %v1417 = vsub.s32 0, %v258
        %v1418 = vsel %vm1416, %v1417, %v258
        %v1419 = vmul.u32.u64.compose %v1418, 2199023256
        %v1420 = vextract.low.u32 %v1419
        %v1421 = vextract.high.u32 %v1419
        %v1422 = vshrl.u32 %v1421, 9
        %v1423 = vmul.u32 %v1422, 1000
        %v1424 = vsub.s32 %v1418, %v1423
        %v1425 = vsub.s32 0, %v1424
        %v1426 = vsel %vm1416, %v1425, %v1424
        %vm1427 = vcmp.lt.s32.totalorder %v259, 0
        %v1428 = vsub.s32 0, %v259
        %v1429 = vsel %vm1427, %v1428, %v259
        %v1430 = vmul.u32.u64.compose %v1429, 2199023256
        %v1431 = vextract.low.u32 %v1430
        %v1432 = vextract.high.u32 %v1430
        %v1433 = vshrl.u32 %v1432, 9
        %v1434 = vmul.u32 %v1433, 1000
        %v1435 = vsub.s32 %v1429, %v1434
        %v1436 = vsub.s32 0, %v1435
        %v1437 = vsel %vm1427, %v1436, %v1435
        %vm1438 = vcmp.lt.s32.totalorder %v260, 0
        %v1439 = vsub.s32 0, %v260
        %v1440 = vsel %vm1438, %v1439, %v260
        %v1441 = vmul.u32.u64.compose %v1440, 2199023256
        %v1442 = vextract.low.u32 %v1441
        %v1443 = vextract.high.u32 %v1441
        %v1444 = vshrl.u32 %v1443, 9
        %v1445 = vmul.u32 %v1444, 1000
        %v1446 = vsub.s32 %v1440, %v1445
        %v1447 = vsub.s32 0, %v1446
        %v1448 = vsel %vm1438, %v1447, %v1446
        %vm1449 = vcmp.lt.s32.totalorder %v261, 0
        %v1450 = vsub.s32 0, %v261
        %v1451 = vsel %vm1449, %v1450, %v261
        %v1452 = vmul.u32.u64.compose %v1451, 2199023256
        %v1453 = vextract.low.u32 %v1452
        %v1454 = vextract.high.u32 %v1452
        %v1455 = vshrl.u32 %v1454, 9
        %v1456 = vmul.u32 %v1455, 1000
        %v1457 = vsub.s32 %v1451, %v1456
        %v1458 = vsub.s32 0, %v1457
        %v1459 = vsel %vm1449, %v1458, %v1457
        %vm1460 = vcmp.lt.s32.totalorder %v262, 0
        %v1461 = vsub.s32 0, %v262
        %v1462 = vsel %vm1460, %v1461, %v262
        %v1463 = vmul.u32.u64.compose %v1462, 2199023256
        %v1464 = vextract.low.u32 %v1463
        %v1465 = vextract.high.u32 %v1463
        %v1466 = vshrl.u32 %v1465, 9
        %v1467 = vmul.u32 %v1466, 1000
        %v1468 = vsub.s32 %v1462, %v1467
        %v1469 = vsub.s32 0, %v1468
        %v1470 = vsel %vm1460, %v1469, %v1468
        %vm1471 = vcmp.lt.s32.totalorder %v263, 0
        %v1472 = vsub.s32 0, %v263
        %v1473 = vsel %vm1471, %v1472, %v263
        %v1474 = vmul.u32.u64.compose %v1473, 2199023256
        %v1475 = vextract.low.u32 %v1474
        %v1476 = vextract.high.u32 %v1474
        %v1477 = vshrl.u32 %v1476, 9
        %v1478 = vmul.u32 %v1477, 1000
        %v1479 = vsub.s32 %v1473, %v1478
        %v1480 = vsub.s32 0, %v1479
        %v1481 = vsel %vm1471, %v1480, %v1479
        %vm1482 = vcmp.lt.s32.totalorder %v264, 0
        %v1483 = vsub.s32 0, %v264
        %v1484 = vsel %vm1482, %v1483, %v264
        %v1485 = vmul.u32.u64.compose %v1484, 2199023256
        %v1486 = vextract.low.u32 %v1485
        %v1487 = vextract.high.u32 %v1485
        %v1488 = vshrl.u32 %v1487, 9
        %v1489 = vmul.u32 %v1488, 1000
        %v1490 = vsub.s32 %v1484, %v1489
        %v1491 = vsub.s32 0, %v1490
        %v1492 = vsel %vm1482, %v1491, %v1490
        %vm1493 = vcmp.lt.s32.totalorder %v265, 0
        %v1494 = vsub.s32 0, %v265
        %v1495 = vsel %vm1493, %v1494, %v265
        %v1496 = vmul.u32.u64.compose %v1495, 2199023256
        %v1497 = vextract.low.u32 %v1496
        %v1498 = vextract.high.u32 %v1496
        %v1499 = vshrl.u32 %v1498, 9
        %v1500 = vmul.u32 %v1499, 1000
        %v1501 = vsub.s32 %v1495, %v1500
        %v1502 = vsub.s32 0, %v1501
        %v1503 = vsel %vm1493, %v1502, %v1501
        %vm1504 = vcmp.lt.s32.totalorder %v266, 0
        %v1505 = vsub.s32 0, %v266
        %v1506 = vsel %vm1504, %v1505, %v266
        %v1507 = vmul.u32.u64.compose %v1506, 2199023256
        %v1508 = vextract.low.u32 %v1507
        %v1509 = vextract.high.u32 %v1507
        %v1510 = vshrl.u32 %v1509, 9
        %v1511 = vmul.u32 %v1510, 1000
        %v1512 = vsub.s32 %v1506, %v1511
        %v1513 = vsub.s32 0, %v1512
        %v1514 = vsel %vm1504, %v1513, %v1512
        %vm1515 = vcmp.lt.s32.totalorder %v267, 0
        %v1516 = vsub.s32 0, %v267
        %v1517 = vsel %vm1515, %v1516, %v267
        %v1518 = vmul.u32.u64.compose %v1517, 2199023256
        %v1519 = vextract.low.u32 %v1518
        %v1520 = vextract.high.u32 %v1518
        %v1521 = vshrl.u32 %v1520, 9
        %v1522 = vmul.u32 %v1521, 1000
        %v1523 = vsub.s32 %v1517, %v1522
        %v1524 = vsub.s32 0, %v1523
        %v1525 = vsel %vm1515, %v1524, %v1523
        %vm1526 = vcmp.lt.s32.totalorder %v268, 0
        %v1527 = vsub.s32 0, %v268
        %v1528 = vsel %vm1526, %v1527, %v268
        %v1529 = vmul.u32.u64.compose %v1528, 2199023256
        %v1530 = vextract.low.u32 %v1529
        %v1531 = vextract.high.u32 %v1529
        %v1532 = vshrl.u32 %v1531, 9
        %v1533 = vmul.u32 %v1532, 1000
        %v1534 = vsub.s32 %v1528, %v1533
        %v1535 = vsub.s32 0, %v1534
        %v1536 = vsel %vm1526, %v1535, %v1534
        %vm1537 = vcmp.lt.s32.totalorder %v269, 0
        %v1538 = vsub.s32 0, %v269
        %v1539 = vsel %vm1537, %v1538, %v269
        %v1540 = vmul.u32.u64.compose %v1539, 2199023256
        %v1541 = vextract.low.u32 %v1540
        %v1542 = vextract.high.u32 %v1540
        %v1543 = vshrl.u32 %v1542, 9
        %v1544 = vmul.u32 %v1543, 1000
        %v1545 = vsub.s32 %v1539, %v1544
        %v1546 = vsub.s32 0, %v1545
        %v1547 = vsel %vm1537, %v1546, %v1545
        %vm1548 = vcmp.lt.s32.totalorder %v270, 0
        %v1549 = vsub.s32 0, %v270
        %v1550 = vsel %vm1548, %v1549, %v270
        %v1551 = vmul.u32.u64.compose %v1550, 2199023256
        %v1552 = vextract.low.u32 %v1551
        %v1553 = vextract.high.u32 %v1551
        %v1554 = vshrl.u32 %v1553, 9
        %v1555 = vmul.u32 %v1554, 1000
        %v1556 = vsub.s32 %v1550, %v1555
        %v1557 = vsub.s32 0, %v1556
        %v1558 = vsel %vm1548, %v1557, %v1556
        %vm1559 = vcmp.lt.s32.totalorder %v271, 0
        %v1560 = vsub.s32 0, %v271
        %v1561 = vsel %vm1559, %v1560, %v271
        %v1562 = vmul.u32.u64.compose %v1561, 2199023256
        %v1563 = vextract.low.u32 %v1562
        %v1564 = vextract.high.u32 %v1562
        %v1565 = vshrl.u32 %v1564, 9
        %v1566 = vmul.u32 %v1565, 1000
        %v1567 = vsub.s32 %v1561, %v1566
        %v1568 = vsub.s32 0, %v1567
        %v1569 = vsel %vm1559, %v1568, %v1567
        %vm1570 = vcmp.lt.s32.totalorder %v272, 0
        %v1571 = vsub.s32 0, %v272
        %v1572 = vsel %vm1570, %v1571, %v272
        %v1573 = vmul.u32.u64.compose %v1572, 2199023256
        %v1574 = vextract.low.u32 %v1573
        %v1575 = vextract.high.u32 %v1573
        %v1576 = vshrl.u32 %v1575, 9
        %v1577 = vmul.u32 %v1576, 1000
        %v1578 = vsub.s32 %v1572, %v1577
        %v1579 = vsub.s32 0, %v1578
        %v1580 = vsel %vm1570, %v1579, %v1578
        %vm1581 = vcmp.lt.s32.totalorder %v273, 0
        %v1582 = vsub.s32 0, %v273
        %v1583 = vsel %vm1581, %v1582, %v273
        %v1584 = vmul.u32.u64.compose %v1583, 2199023256
        %v1585 = vextract.low.u32 %v1584
        %v1586 = vextract.high.u32 %v1584
        %v1587 = vshrl.u32 %v1586, 9
        %v1588 = vmul.u32 %v1587, 1000
        %v1589 = vsub.s32 %v1583, %v1588
        %v1590 = vsub.s32 0, %v1589
        %v1591 = vsel %vm1581, %v1590, %v1589
        %vm1592 = vcmp.lt.s32.totalorder %v274, 0
        %v1593 = vsub.s32 0, %v274
        %v1594 = vsel %vm1592, %v1593, %v274
        %v1595 = vmul.u32.u64.compose %v1594, 2199023256
        %v1596 = vextract.low.u32 %v1595
        %v1597 = vextract.high.u32 %v1595
        %v1598 = vshrl.u32 %v1597, 9
        %v1599 = vmul.u32 %v1598, 1000
        %v1600 = vsub.s32 %v1594, %v1599
        %v1601 = vsub.s32 0, %v1600
        %v1602 = vsel %vm1592, %v1601, %v1600
        %vm1603 = vcmp.lt.s32.totalorder %v275, 0
        %v1604 = vsub.s32 0, %v275
        %v1605 = vsel %vm1603, %v1604, %v275
        %v1606 = vmul.u32.u64.compose %v1605, 2199023256
        %v1607 = vextract.low.u32 %v1606
        %v1608 = vextract.high.u32 %v1606
        %v1609 = vshrl.u32 %v1608, 9
        %v1610 = vmul.u32 %v1609, 1000
        %v1611 = vsub.s32 %v1605, %v1610
        %v1612 = vsub.s32 0, %v1611
        %v1613 = vsel %vm1603, %v1612, %v1611
        %vm1614 = vcmp.lt.s32.totalorder %v276, 0
        %v1615 = vsub.s32 0, %v276
        %v1616 = vsel %vm1614, %v1615, %v276
        %v1617 = vmul.u32.u64.compose %v1616, 2199023256
        %v1618 = vextract.low.u32 %v1617
        %v1619 = vextract.high.u32 %v1617
        %v1620 = vshrl.u32 %v1619, 9
        %v1621 = vmul.u32 %v1620, 1000
        %v1622 = vsub.s32 %v1616, %v1621
        %v1623 = vsub.s32 0, %v1622
        %v1624 = vsel %vm1614, %v1623, %v1622
        %vm1625 = vcmp.lt.s32.totalorder %v277, 0
        %v1626 = vsub.s32 0, %v277
        %v1627 = vsel %vm1625, %v1626, %v277
        %v1628 = vmul.u32.u64.compose %v1627, 2199023256
        %v1629 = vextract.low.u32 %v1628
        %v1630 = vextract.high.u32 %v1628
        %v1631 = vshrl.u32 %v1630, 9
        %v1632 = vmul.u32 %v1631, 1000
        %v1633 = vsub.s32 %v1627, %v1632
        %v1634 = vsub.s32 0, %v1633
        %v1635 = vsel %vm1625, %v1634, %v1633
        %vm1636 = vcmp.lt.s32.totalorder %v278, 0
        %v1637 = vsub.s32 0, %v278
        %v1638 = vsel %vm1636, %v1637, %v278
        %v1639 = vmul.u32.u64.compose %v1638, 2199023256
        %v1640 = vextract.low.u32 %v1639
        %v1641 = vextract.high.u32 %v1639
        %v1642 = vshrl.u32 %v1641, 9
        %v1643 = vmul.u32 %v1642, 1000
        %v1644 = vsub.s32 %v1638, %v1643
        %v1645 = vsub.s32 0, %v1644
        %v1646 = vsel %vm1636, %v1645, %v1644
        %vm1647 = vcmp.lt.s32.totalorder %v279, 0
        %v1648 = vsub.s32 0, %v279
        %v1649 = vsel %vm1647, %v1648, %v279
        %v1650 = vmul.u32.u64.compose %v1649, 2199023256
        %v1651 = vextract.low.u32 %v1650
        %v1652 = vextract.high.u32 %v1650
        %v1653 = vshrl.u32 %v1652, 9
        %v1654 = vmul.u32 %v1653, 1000
        %v1655 = vsub.s32 %v1649, %v1654
        %v1656 = vsub.s32 0, %v1655
        %v1657 = vsel %vm1647, %v1656, %v1655
        %vm1658 = vcmp.lt.s32.totalorder %v280, 0
        %v1659 = vsub.s32 0, %v280
        %v1660 = vsel %vm1658, %v1659, %v280
        %v1661 = vmul.u32.u64.compose %v1660, 2199023256
        %v1662 = vextract.low.u32 %v1661
        %v1663 = vextract.high.u32 %v1661
        %v1664 = vshrl.u32 %v1663, 9
        %v1665 = vmul.u32 %v1664, 1000
        %v1666 = vsub.s32 %v1660, %v1665
        %v1667 = vsub.s32 0, %v1666
        %v1668 = vsel %vm1658, %v1667, %v1666
        %vm1669 = vcmp.lt.s32.totalorder %v281, 0
        %v1670 = vsub.s32 0, %v281
        %v1671 = vsel %vm1669, %v1670, %v281
        %v1672 = vmul.u32.u64.compose %v1671, 2199023256
        %v1673 = vextract.low.u32 %v1672
        %v1674 = vextract.high.u32 %v1672
        %v1675 = vshrl.u32 %v1674, 9
        %v1676 = vmul.u32 %v1675, 1000
        %v1677 = vsub.s32 %v1671, %v1676
        %v1678 = vsub.s32 0, %v1677
        %v1679 = vsel %vm1669, %v1678, %v1677
        %vm1680 = vcmp.lt.s32.totalorder %v282, 0
        %v1681 = vsub.s32 0, %v282
        %v1682 = vsel %vm1680, %v1681, %v282
        %v1683 = vmul.u32.u64.compose %v1682, 2199023256
        %v1684 = vextract.low.u32 %v1683
        %v1685 = vextract.high.u32 %v1683
        %v1686 = vshrl.u32 %v1685, 9
        %v1687 = vmul.u32 %v1686, 1000
        %v1688 = vsub.s32 %v1682, %v1687
        %v1689 = vsub.s32 0, %v1688
        %v1690 = vsel %vm1680, %v1689, %v1688
        %vm1691 = vcmp.ne.s32.totalorder %v293, 0
        %vm1692 = vcmp.ne.s32.totalorder %v304, 0
        %vm1693 = vcmp.ne.s32.totalorder %v315, 0
        %vm1694 = vcmp.ne.s32.totalorder %v326, 0
        %vm1695 = vcmp.ne.s32.totalorder %v337, 0
        %vm1696 = vcmp.ne.s32.totalorder %v348, 0
        %vm1697 = vcmp.ne.s32.totalorder %v359, 0
        %vm1698 = vcmp.ne.s32.totalorder %v370, 0
        %vm1699 = vcmp.ne.s32.totalorder %v381, 0
        %vm1700 = vcmp.ne.s32.totalorder %v392, 0
        %vm1701 = vcmp.ne.s32.totalorder %v403, 0
        %vm1702 = vcmp.ne.s32.totalorder %v414, 0
        %vm1703 = vcmp.ne.s32.totalorder %v425, 0
        %vm1704 = vcmp.ne.s32.totalorder %v436, 0
        %vm1705 = vcmp.ne.s32.totalorder %v447, 0
        %vm1706 = vcmp.ne.s32.totalorder %v458, 0
        %vm1707 = vcmp.ne.s32.totalorder %v469, 0
        %vm1708 = vcmp.ne.s32.totalorder %v480, 0
        %vm1709 = vcmp.ne.s32.totalorder %v491, 0
        %vm1710 = vcmp.ne.s32.totalorder %v502, 0
        %vm1711 = vcmp.ne.s32.totalorder %v513, 0
        %vm1712 = vcmp.ne.s32.totalorder %v524, 0
        %vm1713 = vcmp.ne.s32.totalorder %v535, 0
        %vm1714 = vcmp.ne.s32.totalorder %v546, 0
        %vm1715 = vcmp.ne.s32.totalorder %v557, 0
        %vm1716 = vcmp.ne.s32.totalorder %v568, 0
        %vm1717 = vcmp.ne.s32.totalorder %v579, 0
        %vm1718 = vcmp.ne.s32.totalorder %v590, 0
        %vm1719 = vcmp.ne.s32.totalorder %v601, 0
        %vm1720 = vcmp.ne.s32.totalorder %v612, 0
        %vm1721 = vcmp.ne.s32.totalorder %v623, 0
        %vm1722 = vcmp.ne.s32.totalorder %v634, 0
        %vm1723 = vcmp.ne.s32.totalorder %v645, 0
        %vm1724 = vcmp.ne.s32.totalorder %v656, 0
        %vm1725 = vcmp.ne.s32.totalorder %v667, 0
        %vm1726 = vcmp.ne.s32.totalorder %v678, 0
        %vm1727 = vcmp.ne.s32.totalorder %v689, 0
        %vm1728 = vcmp.ne.s32.totalorder %v700, 0
        %vm1729 = vcmp.ne.s32.totalorder %v711, 0
        %vm1730 = vcmp.ne.s32.totalorder %v722, 0
        %vm1731 = vcmp.ne.s32.totalorder %v733, 0
        %vm1732 = vcmp.ne.s32.totalorder %v744, 0
        %vm1733 = vcmp.ne.s32.totalorder %v755, 0
        %vm1734 = vcmp.ne.s32.totalorder %v766, 0
        %vm1735 = vcmp.ne.s32.totalorder %v777, 0
        %vm1736 = vcmp.ne.s32.totalorder %v788, 0
        %vm1737 = vcmp.ne.s32.totalorder %v799, 0
        %vm1738 = vcmp.ne.s32.totalorder %v810, 0
        %vm1739 = vcmp.ne.s32.totalorder %v821, 0
        %vm1740 = vcmp.ne.s32.totalorder %v832, 0
        %vm1741 = vcmp.ne.s32.totalorder %v843, 0
        %vm1742 = vcmp.ne.s32.totalorder %v854, 0
        %vm1743 = vcmp.ne.s32.totalorder %v865, 0
        %vm1744 = vcmp.ne.s32.totalorder %v876, 0
        %vm1745 = vcmp.ne.s32.totalorder %v887, 0
        %vm1746 = vcmp.ne.s32.totalorder %v898, 0
        %vm1747 = vcmp.ne.s32.totalorder %v909, 0
        %vm1748 = vcmp.ne.s32.totalorder %v920, 0
        %vm1749 = vcmp.ne.s32.totalorder %v931, 0
        %vm1750 = vcmp.ne.s32.totalorder %v942, 0
        %vm1751 = vcmp.ne.s32.totalorder %v953, 0
        %vm1752 = vcmp.ne.s32.totalorder %v964, 0
        %vm1753 = vcmp.ne.s32.totalorder %v975, 0
        %vm1754 = vcmp.ne.s32.totalorder %v986, 0
        %vm1755 = vcmp.ne.s32.totalorder %v997, 0
        %vm1756 = vcmp.ne.s32.totalorder %v1008, 0
        %vm1757 = vcmp.ne.s32.totalorder %v1019, 0
        %vm1758 = vcmp.ne.s32.totalorder %v1030, 0
        %vm1759 = vcmp.ne.s32.totalorder %v1041, 0
        %vm1760 = vcmp.ne.s32.totalorder %v1052, 0
        %vm1761 = vcmp.ne.s32.totalorder %v1063, 0
        %vm1762 = vcmp.ne.s32.totalorder %v1074, 0
        %vm1763 = vcmp.ne.s32.totalorder %v1085, 0
        %vm1764 = vcmp.ne.s32.totalorder %v1096, 0
        %vm1765 = vcmp.ne.s32.totalorder %v1107, 0
        %vm1766 = vcmp.ne.s32.totalorder %v1118, 0
        %vm1767 = vcmp.ne.s32.totalorder %v1129, 0
        %vm1768 = vcmp.ne.s32.totalorder %v1140, 0
        %vm1769 = vcmp.ne.s32.totalorder %v1151, 0
        %vm1770 = vcmp.ne.s32.totalorder %v1162, 0
        %vm1771 = vcmp.ne.s32.totalorder %v1173, 0
        %vm1772 = vcmp.ne.s32.totalorder %v1184, 0
        %vm1773 = vcmp.ne.s32.totalorder %v1195, 0
        %vm1774 = vcmp.ne.s32.totalorder %v1206, 0
        %vm1775 = vcmp.ne.s32.totalorder %v1217, 0
        %vm1776 = vcmp.ne.s32.totalorder %v1228, 0
        %vm1777 = vcmp.ne.s32.totalorder %v1239, 0
        %vm1778 = vcmp.ne.s32.totalorder %v1250, 0
        %vm1779 = vcmp.ne.s32.totalorder %v1261, 0
        %vm1780 = vcmp.ne.s32.totalorder %v1272, 0
        %vm1781 = vcmp.ne.s32.totalorder %v1283, 0
        %vm1782 = vcmp.ne.s32.totalorder %v1294, 0
        %vm1783 = vcmp.ne.s32.totalorder %v1305, 0
        %vm1784 = vcmp.ne.s32.totalorder %v1316, 0
        %vm1785 = vcmp.ne.s32.totalorder %v1327, 0
        %vm1786 = vcmp.ne.s32.totalorder %v1338, 0
        %vm1787 = vcmp.ne.s32.totalorder %v1349, 0
        %vm1788 = vcmp.ne.s32.totalorder %v1360, 0
        %vm1789 = vcmp.ne.s32.totalorder %v1371, 0
        %vm1790 = vcmp.ne.s32.totalorder %v1382, 0
        %vm1791 = vcmp.ne.s32.totalorder %v1393, 0
        %vm1792 = vcmp.ne.s32.totalorder %v1404, 0
        %vm1793 = vcmp.ne.s32.totalorder %v1415, 0
        %vm1794 = vcmp.ne.s32.totalorder %v1426, 0
        %vm1795 = vcmp.ne.s32.totalorder %v1437, 0
        %vm1796 = vcmp.ne.s32.totalorder %v1448, 0
        %vm1797 = vcmp.ne.s32.totalorder %v1459, 0
        %vm1798 = vcmp.ne.s32.totalorder %v1470, 0
        %vm1799 = vcmp.ne.s32.totalorder %v1481, 0
        %vm1800 = vcmp.ne.s32.totalorder %v1492, 0
        %vm1801 = vcmp.ne.s32.totalorder %v1503, 0
        %vm1802 = vcmp.ne.s32.totalorder %v1514, 0
        %vm1803 = vcmp.ne.s32.totalorder %v1525, 0
        %vm1804 = vcmp.ne.s32.totalorder %v1536, 0
        %vm1805 = vcmp.ne.s32.totalorder %v1547, 0
        %vm1806 = vcmp.ne.s32.totalorder %v1558, 0
        %vm1807 = vcmp.ne.s32.totalorder %v1569, 0
        %vm1808 = vcmp.ne.s32.totalorder %v1580, 0
        %vm1809 = vcmp.ne.s32.totalorder %v1591, 0
        %vm1810 = vcmp.ne.s32.totalorder %v1602, 0
        %vm1811 = vcmp.ne.s32.totalorder %v1613, 0
        %vm1812 = vcmp.ne.s32.totalorder %v1624, 0
        %vm1813 = vcmp.ne.s32.totalorder %v1635, 0
        %vm1814 = vcmp.ne.s32.totalorder %v1646, 0
        %vm1815 = vcmp.ne.s32.totalorder %v1657, 0
        %vm1816 = vcmp.ne.s32.totalorder %v1668, 0
        %vm1817 = vcmp.ne.s32.totalorder %v1679, 0
        %vm1818 = vcmp.ne.s32.totalorder %v1690, 0
        %vm1819 = vcmp.lt.s32.totalorder %v293, 0
        %vm1820 = vcmp.lt.s32.totalorder %v304, 0
        %vm1821 = vcmp.lt.s32.totalorder %v315, 0
        %vm1822 = vcmp.lt.s32.totalorder %v326, 0
        %vm1823 = vcmp.lt.s32.totalorder %v337, 0
        %vm1824 = vcmp.lt.s32.totalorder %v348, 0
        %vm1825 = vcmp.lt.s32.totalorder %v359, 0
        %vm1826 = vcmp.lt.s32.totalorder %v370, 0
        %vm1827 = vcmp.lt.s32.totalorder %v381, 0
        %vm1828 = vcmp.lt.s32.totalorder %v392, 0
        %vm1829 = vcmp.lt.s32.totalorder %v403, 0
        %vm1830 = vcmp.lt.s32.totalorder %v414, 0
        %vm1831 = vcmp.lt.s32.totalorder %v425, 0
        %vm1832 = vcmp.lt.s32.totalorder %v436, 0
        %vm1833 = vcmp.lt.s32.totalorder %v447, 0
        %vm1834 = vcmp.lt.s32.totalorder %v458, 0
        %vm1835 = vcmp.lt.s32.totalorder %v469, 0
        %vm1836 = vcmp.lt.s32.totalorder %v480, 0
        %vm1837 = vcmp.lt.s32.totalorder %v491, 0
        %vm1838 = vcmp.lt.s32.totalorder %v502, 0
        %vm1839 = vcmp.lt.s32.totalorder %v513, 0
        %vm1840 = vcmp.lt.s32.totalorder %v524, 0
        %vm1841 = vcmp.lt.s32.totalorder %v535, 0
        %vm1842 = vcmp.lt.s32.totalorder %v546, 0
        %vm1843 = vcmp.lt.s32.totalorder %v557, 0
        %vm1844 = vcmp.lt.s32.totalorder %v568, 0
        %vm1845 = vcmp.lt.s32.totalorder %v579, 0
        %vm1846 = vcmp.lt.s32.totalorder %v590, 0
        %vm1847 = vcmp.lt.s32.totalorder %v601, 0
        %vm1848 = vcmp.lt.s32.totalorder %v612, 0
        %vm1849 = vcmp.lt.s32.totalorder %v623, 0
        %vm1850 = vcmp.lt.s32.totalorder %v634, 0
        %vm1851 = vcmp.lt.s32.totalorder %v645, 0
        %vm1852 = vcmp.lt.s32.totalorder %v656, 0
        %vm1853 = vcmp.lt.s32.totalorder %v667, 0
        %vm1854 = vcmp.lt.s32.totalorder %v678, 0
        %vm1855 = vcmp.lt.s32.totalorder %v689, 0
        %vm1856 = vcmp.lt.s32.totalorder %v700, 0
        %vm1857 = vcmp.lt.s32.totalorder %v711, 0
        %vm1858 = vcmp.lt.s32.totalorder %v722, 0
        %vm1859 = vcmp.lt.s32.totalorder %v733, 0
        %vm1860 = vcmp.lt.s32.totalorder %v744, 0
        %vm1861 = vcmp.lt.s32.totalorder %v755, 0
        %vm1862 = vcmp.lt.s32.totalorder %v766, 0
        %vm1863 = vcmp.lt.s32.totalorder %v777, 0
        %vm1864 = vcmp.lt.s32.totalorder %v788, 0
        %vm1865 = vcmp.lt.s32.totalorder %v799, 0
        %vm1866 = vcmp.lt.s32.totalorder %v810, 0
        %vm1867 = vcmp.lt.s32.totalorder %v821, 0
        %vm1868 = vcmp.lt.s32.totalorder %v832, 0
        %vm1869 = vcmp.lt.s32.totalorder %v843, 0
        %vm1870 = vcmp.lt.s32.totalorder %v854, 0
        %vm1871 = vcmp.lt.s32.totalorder %v865, 0
        %vm1872 = vcmp.lt.s32.totalorder %v876, 0
        %vm1873 = vcmp.lt.s32.totalorder %v887, 0
        %vm1874 = vcmp.lt.s32.totalorder %v898, 0
        %vm1875 = vcmp.lt.s32.totalorder %v909, 0
        %vm1876 = vcmp.lt.s32.totalorder %v920, 0
        %vm1877 = vcmp.lt.s32.totalorder %v931, 0
        %vm1878 = vcmp.lt.s32.totalorder %v942, 0
        %vm1879 = vcmp.lt.s32.totalorder %v953, 0
        %vm1880 = vcmp.lt.s32.totalorder %v964, 0
        %vm1881 = vcmp.lt.s32.totalorder %v975, 0
        %vm1882 = vcmp.lt.s32.totalorder %v986, 0
        %vm1883 = vcmp.lt.s32.totalorder %v997, 0
        %vm1884 = vcmp.lt.s32.totalorder %v1008, 0
        %vm1885 = vcmp.lt.s32.totalorder %v1019, 0
        %vm1886 = vcmp.lt.s32.totalorder %v1030, 0
        %vm1887 = vcmp.lt.s32.totalorder %v1041, 0
        %vm1888 = vcmp.lt.s32.totalorder %v1052, 0
        %vm1889 = vcmp.lt.s32.totalorder %v1063, 0
        %vm1890 = vcmp.lt.s32.totalorder %v1074, 0
        %vm1891 = vcmp.lt.s32.totalorder %v1085, 0
        %vm1892 = vcmp.lt.s32.totalorder %v1096, 0
        %vm1893 = vcmp.lt.s32.totalorder %v1107, 0
        %vm1894 = vcmp.lt.s32.totalorder %v1118, 0
        %vm1895 = vcmp.lt.s32.totalorder %v1129, 0
        %vm1896 = vcmp.lt.s32.totalorder %v1140, 0
        %vm1897 = vcmp.lt.s32.totalorder %v1151, 0
        %vm1898 = vcmp.lt.s32.totalorder %v1162, 0
        %vm1899 = vcmp.lt.s32.totalorder %v1173, 0
        %vm1900 = vcmp.lt.s32.totalorder %v1184, 0
        %vm1901 = vcmp.lt.s32.totalorder %v1195, 0
        %vm1902 = vcmp.lt.s32.totalorder %v1206, 0
        %vm1903 = vcmp.lt.s32.totalorder %v1217, 0
        %vm1904 = vcmp.lt.s32.totalorder %v1228, 0
        %vm1905 = vcmp.lt.s32.totalorder %v1239, 0
        %vm1906 = vcmp.lt.s32.totalorder %v1250, 0
        %vm1907 = vcmp.lt.s32.totalorder %v1261, 0
        %vm1908 = vcmp.lt.s32.totalorder %v1272, 0
        %vm1909 = vcmp.lt.s32.totalorder %v1283, 0
        %vm1910 = vcmp.lt.s32.totalorder %v1294, 0
        %vm1911 = vcmp.lt.s32.totalorder %v1305, 0
        %vm1912 = vcmp.lt.s32.totalorder %v1316, 0
        %vm1913 = vcmp.lt.s32.totalorder %v1327, 0
        %vm1914 = vcmp.lt.s32.totalorder %v1338, 0
        %vm1915 = vcmp.lt.s32.totalorder %v1349, 0
        %vm1916 = vcmp.lt.s32.totalorder %v1360, 0
        %vm1917 = vcmp.lt.s32.totalorder %v1371, 0
        %vm1918 = vcmp.lt.s32.totalorder %v1382, 0
        %vm1919 = vcmp.lt.s32.totalorder %v1393, 0
        %vm1920 = vcmp.lt.s32.totalorder %v1404, 0
        %vm1921 = vcmp.lt.s32.totalorder %v1415, 0
        %vm1922 = vcmp.lt.s32.totalorder %v1426, 0
        %vm1923 = vcmp.lt.s32.totalorder %v1437, 0
        %vm1924 = vcmp.lt.s32.totalorder %v1448, 0
        %vm1925 = vcmp.lt.s32.totalorder %v1459, 0
        %vm1926 = vcmp.lt.s32.totalorder %v1470, 0
        %vm1927 = vcmp.lt.s32.totalorder %v1481, 0
        %vm1928 = vcmp.lt.s32.totalorder %v1492, 0
        %vm1929 = vcmp.lt.s32.totalorder %v1503, 0
        %vm1930 = vcmp.lt.s32.totalorder %v1514, 0
        %vm1931 = vcmp.lt.s32.totalorder %v1525, 0
        %vm1932 = vcmp.lt.s32.totalorder %v1536, 0
        %vm1933 = vcmp.lt.s32.totalorder %v1547, 0
        %vm1934 = vcmp.lt.s32.totalorder %v1558, 0
        %vm1935 = vcmp.lt.s32.totalorder %v1569, 0
        %vm1936 = vcmp.lt.s32.totalorder %v1580, 0
        %vm1937 = vcmp.lt.s32.totalorder %v1591, 0
        %vm1938 = vcmp.lt.s32.totalorder %v1602, 0
        %vm1939 = vcmp.lt.s32.totalorder %v1613, 0
        %vm1940 = vcmp.lt.s32.totalorder %v1624, 0
        %vm1941 = vcmp.lt.s32.totalorder %v1635, 0
        %vm1942 = vcmp.lt.s32.totalorder %v1646, 0
        %vm1943 = vcmp.lt.s32.totalorder %v1657, 0
        %vm1944 = vcmp.lt.s32.totalorder %v1668, 0
        %vm1945 = vcmp.lt.s32.totalorder %v1679, 0
        %vm1946 = vcmp.lt.s32.totalorder %v1690, 0
        %vm1947 = vmand %vm1819, %vm1691
        %vm1948 = vmand %vm1820, %vm1692
        %vm1949 = vmand %vm1821, %vm1693
        %vm1950 = vmand %vm1822, %vm1694
        %vm1951 = vmand %vm1823, %vm1695
        %vm1952 = vmand %vm1824, %vm1696
        %vm1953 = vmand %vm1825, %vm1697
        %vm1954 = vmand %vm1826, %vm1698
        %vm1955 = vmand %vm1827, %vm1699
        %vm1956 = vmand %vm1828, %vm1700
        %vm1957 = vmand %vm1829, %vm1701
        %vm1958 = vmand %vm1830, %vm1702
        %vm1959 = vmand %vm1831, %vm1703
        %vm1960 = vmand %vm1832, %vm1704
        %vm1961 = vmand %vm1833, %vm1705
        %vm1962 = vmand %vm1834, %vm1706
        %vm1963 = vmand %vm1835, %vm1707
        %vm1964 = vmand %vm1836, %vm1708
        %vm1965 = vmand %vm1837, %vm1709
        %vm1966 = vmand %vm1838, %vm1710
        %vm1967 = vmand %vm1839, %vm1711
        %vm1968 = vmand %vm1840, %vm1712
        %vm1969 = vmand %vm1841, %vm1713
        %vm1970 = vmand %vm1842, %vm1714
        %vm1971 = vmand %vm1843, %vm1715
        %vm1972 = vmand %vm1844, %vm1716
        %vm1973 = vmand %vm1845, %vm1717
        %vm1974 = vmand %vm1846, %vm1718
        %vm1975 = vmand %vm1847, %vm1719
        %vm1976 = vmand %vm1848, %vm1720
        %vm1977 = vmand %vm1849, %vm1721
        %vm1978 = vmand %vm1850, %vm1722
        %vm1979 = vmand %vm1851, %vm1723
        %vm1980 = vmand %vm1852, %vm1724
        %vm1981 = vmand %vm1853, %vm1725
        %vm1982 = vmand %vm1854, %vm1726
        %vm1983 = vmand %vm1855, %vm1727
        %vm1984 = vmand %vm1856, %vm1728
        %vm1985 = vmand %vm1857, %vm1729
        %vm1986 = vmand %vm1858, %vm1730
        %vm1987 = vmand %vm1859, %vm1731
        %vm1988 = vmand %vm1860, %vm1732
        %vm1989 = vmand %vm1861, %vm1733
        %vm1990 = vmand %vm1862, %vm1734
        %vm1991 = vmand %vm1863, %vm1735
        %vm1992 = vmand %vm1864, %vm1736
        %vm1993 = vmand %vm1865, %vm1737
        %vm1994 = vmand %vm1866, %vm1738
        %vm1995 = vmand %vm1867, %vm1739
        %vm1996 = vmand %vm1868, %vm1740
        %vm1997 = vmand %vm1869, %vm1741
        %vm1998 = vmand %vm1870, %vm1742
        %vm1999 = vmand %vm1871, %vm1743
        %vm2000 = vmand %vm1872, %vm1744
        %vm2001 = vmand %vm1873, %vm1745
        %vm2002 = vmand %vm1874, %vm1746
        %vm2003 = vmand %vm1875, %vm1747
        %vm2004 = vmand %vm1876, %vm1748
        %vm2005 = vmand %vm1877, %vm1749
        %vm2006 = vmand %vm1878, %vm1750
        %vm2007 = vmand %vm1879, %vm1751
        %vm2008 = vmand %vm1880, %vm1752
        %vm2009 = vmand %vm1881, %vm1753
        %vm2010 = vmand %vm1882, %vm1754
        %vm2011 = vmand %vm1883, %vm1755
        %vm2012 = vmand %vm1884, %vm1756
        %vm2013 = vmand %vm1885, %vm1757
        %vm2014 = vmand %vm1886, %vm1758
        %vm2015 = vmand %vm1887, %vm1759
        %vm2016 = vmand %vm1888, %vm1760
        %vm2017 = vmand %vm1889, %vm1761
        %vm2018 = vmand %vm1890, %vm1762
        %vm2019 = vmand %vm1891, %vm1763
        %vm2020 = vmand %vm1892, %vm1764
        %vm2021 = vmand %vm1893, %vm1765
        %vm2022 = vmand %vm1894, %vm1766
        %vm2023 = vmand %vm1895, %vm1767
        %vm2024 = vmand %vm1896, %vm1768
        %vm2025 = vmand %vm1897, %vm1769
        %vm2026 = vmand %vm1898, %vm1770
        %vm2027 = vmand %vm1899, %vm1771
        %vm2028 = vmand %vm1900, %vm1772
        %vm2029 = vmand %vm1901, %vm1773
        %vm2030 = vmand %vm1902, %vm1774
        %vm2031 = vmand %vm1903, %vm1775
        %vm2032 = vmand %vm1904, %vm1776
        %vm2033 = vmand %vm1905, %vm1777
        %vm2034 = vmand %vm1906, %vm1778
        %vm2035 = vmand %vm1907, %vm1779
        %vm2036 = vmand %vm1908, %vm1780
        %vm2037 = vmand %vm1909, %vm1781
        %vm2038 = vmand %vm1910, %vm1782
        %vm2039 = vmand %vm1911, %vm1783
        %vm2040 = vmand %vm1912, %vm1784
        %vm2041 = vmand %vm1913, %vm1785
        %vm2042 = vmand %vm1914, %vm1786
        %vm2043 = vmand %vm1915, %vm1787
        %vm2044 = vmand %vm1916, %vm1788
        %vm2045 = vmand %vm1917, %vm1789
        %vm2046 = vmand %vm1918, %vm1790
        %vm2047 = vmand %vm1919, %vm1791
        %vm2048 = vmand %vm1920, %vm1792
        %vm2049 = vmand %vm1921, %vm1793
        %vm2050 = vmand %vm1922, %vm1794
        %vm2051 = vmand %vm1923, %vm1795
        %vm2052 = vmand %vm1924, %vm1796
        %vm2053 = vmand %vm1925, %vm1797
        %vm2054 = vmand %vm1926, %vm1798
        %vm2055 = vmand %vm1927, %vm1799
        %vm2056 = vmand %vm1928, %vm1800
        %vm2057 = vmand %vm1929, %vm1801
        %vm2058 = vmand %vm1930, %vm1802
        %vm2059 = vmand %vm1931, %vm1803
        %vm2060 = vmand %vm1932, %vm1804
        %vm2061 = vmand %vm1933, %vm1805
        %vm2062 = vmand %vm1934, %vm1806
        %vm2063 = vmand %vm1935, %vm1807
        %vm2064 = vmand %vm1936, %vm1808
        %vm2065 = vmand %vm1937, %vm1809
        %vm2066 = vmand %vm1938, %vm1810
        %vm2067 = vmand %vm1939, %vm1811
        %vm2068 = vmand %vm1940, %vm1812
        %vm2069 = vmand %vm1941, %vm1813
        %vm2070 = vmand %vm1942, %vm1814
        %vm2071 = vmand %vm1943, %vm1815
        %vm2072 = vmand %vm1944, %vm1816
        %vm2073 = vmand %vm1945, %vm1817
        %vm2074 = vmand %vm1946, %vm1818
        %v2075 = vadd.s32 %v293, 1000
        %v2076 = vadd.s32 %v304, 1000
        %v2077 = vadd.s32 %v315, 1000
        %v2078 = vadd.s32 %v326, 1000
        %v2079 = vadd.s32 %v337, 1000
        %v2080 = vadd.s32 %v348, 1000
        %v2081 = vadd.s32 %v359, 1000
        %v2082 = vadd.s32 %v370, 1000
        %v2083 = vadd.s32 %v381, 1000
        %v2084 = vadd.s32 %v392, 1000
        %v2085 = vadd.s32 %v403, 1000
        %v2086 = vadd.s32 %v414, 1000
        %v2087 = vadd.s32 %v425, 1000
        %v2088 = vadd.s32 %v436, 1000
        %v2089 = vadd.s32 %v447, 1000
        %v2090 = vadd.s32 %v458, 1000
        %v2091 = vadd.s32 %v469, 1000
        %v2092 = vadd.s32 %v480, 1000
        %v2093 = vadd.s32 %v491, 1000
        %v2094 = vadd.s32 %v502, 1000
        %v2095 = vadd.s32 %v513, 1000
        %v2096 = vadd.s32 %v524, 1000
        %v2097 = vadd.s32 %v535, 1000
        %v2098 = vadd.s32 %v546, 1000
        %v2099 = vadd.s32 %v557, 1000
        %v2100 = vadd.s32 %v568, 1000
        %v2101 = vadd.s32 %v579, 1000
        %v2102 = vadd.s32 %v590, 1000
        %v2103 = vadd.s32 %v601, 1000
        %v2104 = vadd.s32 %v612, 1000
        %v2105 = vadd.s32 %v623, 1000
        %v2106 = vadd.s32 %v634, 1000
        %v2107 = vadd.s32 %v645, 1000
        %v2108 = vadd.s32 %v656, 1000
        %v2109 = vadd.s32 %v667, 1000
        %v2110 = vadd.s32 %v678, 1000
        %v2111 = vadd.s32 %v689, 1000
        %v2112 = vadd.s32 %v700, 1000
        %v2113 = vadd.s32 %v711, 1000
        %v2114 = vadd.s32 %v722, 1000
        %v2115 = vadd.s32 %v733, 1000
        %v2116 = vadd.s32 %v744, 1000
        %v2117 = vadd.s32 %v755, 1000
        %v2118 = vadd.s32 %v766, 1000
        %v2119 = vadd.s32 %v777, 1000
        %v2120 = vadd.s32 %v788, 1000
        %v2121 = vadd.s32 %v799, 1000
        %v2122 = vadd.s32 %v810, 1000
        %v2123 = vadd.s32 %v821, 1000
        %v2124 = vadd.s32 %v832, 1000
        %v2125 = vadd.s32 %v843, 1000
        %v2126 = vadd.s32 %v854, 1000
        %v2127 = vadd.s32 %v865, 1000
        %v2128 = vadd.s32 %v876, 1000
        %v2129 = vadd.s32 %v887, 1000
        %v2130 = vadd.s32 %v898, 1000
        %v2131 = vadd.s32 %v909, 1000
        %v2132 = vadd.s32 %v920, 1000
        %v2133 = vadd.s32 %v931, 1000
        %v2134 = vadd.s32 %v942, 1000
        %v2135 = vadd.s32 %v953, 1000
        %v2136 = vadd.s32 %v964, 1000
        %v2137 = vadd.s32 %v975, 1000
        %v2138 = vadd.s32 %v986, 1000
        %v2139 = vadd.s32 %v997, 1000
        %v2140 = vadd.s32 %v1008, 1000
        %v2141 = vadd.s32 %v1019, 1000
        %v2142 = vadd.s32 %v1030, 1000
        %v2143 = vadd.s32 %v1041, 1000
        %v2144 = vadd.s32 %v1052, 1000
        %v2145 = vadd.s32 %v1063, 1000
        %v2146 = vadd.s32 %v1074, 1000
        %v2147 = vadd.s32 %v1085, 1000
        %v2148 = vadd.s32 %v1096, 1000
        %v2149 = vadd.s32 %v1107, 1000
        %v2150 = vadd.s32 %v1118, 1000
        %v2151 = vadd.s32 %v1129, 1000
        %v2152 = vadd.s32 %v1140, 1000
        %v2153 = vadd.s32 %v1151, 1000
        %v2154 = vadd.s32 %v1162, 1000
        %v2155 = vadd.s32 %v1173, 1000
        %v2156 = vadd.s32 %v1184, 1000
        %v2157 = vadd.s32 %v1195, 1000
        %v2158 = vadd.s32 %v1206, 1000
        %v2159 = vadd.s32 %v1217, 1000
        %v2160 = vadd.s32 %v1228, 1000
        %v2161 = vadd.s32 %v1239, 1000
        %v2162 = vadd.s32 %v1250, 1000
        %v2163 = vadd.s32 %v1261, 1000
        %v2164 = vadd.s32 %v1272, 1000
        %v2165 = vadd.s32 %v1283, 1000
        %v2166 = vadd.s32 %v1294, 1000
        %v2167 = vadd.s32 %v1305, 1000
        %v2168 = vadd.s32 %v1316, 1000
        %v2169 = vadd.s32 %v1327, 1000
        %v2170 = vadd.s32 %v1338, 1000
        %v2171 = vadd.s32 %v1349, 1000
        %v2172 = vadd.s32 %v1360, 1000
        %v2173 = vadd.s32 %v1371, 1000
        %v2174 = vadd.s32 %v1382, 1000
        %v2175 = vadd.s32 %v1393, 1000
        %v2176 = vadd.s32 %v1404, 1000
        %v2177 = vadd.s32 %v1415, 1000
        %v2178 = vadd.s32 %v1426, 1000
        %v2179 = vadd.s32 %v1437, 1000
        %v2180 = vadd.s32 %v1448, 1000
        %v2181 = vadd.s32 %v1459, 1000
        %v2182 = vadd.s32 %v1470, 1000
        %v2183 = vadd.s32 %v1481, 1000
        %v2184 = vadd.s32 %v1492, 1000
        %v2185 = vadd.s32 %v1503, 1000
        %v2186 = vadd.s32 %v1514, 1000
        %v2187 = vadd.s32 %v1525, 1000
        %v2188 = vadd.s32 %v1536, 1000
        %v2189 = vadd.s32 %v1547, 1000
        %v2190 = vadd.s32 %v1558, 1000
        %v2191 = vadd.s32 %v1569, 1000
        %v2192 = vadd.s32 %v1580, 1000
        %v2193 = vadd.s32 %v1591, 1000
        %v2194 = vadd.s32 %v1602, 1000
        %v2195 = vadd.s32 %v1613, 1000
        %v2196 = vadd.s32 %v1624, 1000
        %v2197 = vadd.s32 %v1635, 1000
        %v2198 = vadd.s32 %v1646, 1000
        %v2199 = vadd.s32 %v1657, 1000
        %v2200 = vadd.s32 %v1668, 1000
        %v2201 = vadd.s32 %v1679, 1000
        %v2202 = vadd.s32 %v1690, 1000
        %v2203 = vsel %vm1947, %v2075, %v293
        %v2204 = vsel %vm1948, %v2076, %v304
        %v2205 = vsel %vm1949, %v2077, %v315
        %v2206 = vsel %vm1950, %v2078, %v326
        %v2207 = vsel %vm1951, %v2079, %v337
        %v2208 = vsel %vm1952, %v2080, %v348
        %v2209 = vsel %vm1953, %v2081, %v359
        %v2210 = vsel %vm1954, %v2082, %v370
        %v2211 = vsel %vm1955, %v2083, %v381
        %v2212 = vsel %vm1956, %v2084, %v392
        %v2213 = vsel %vm1957, %v2085, %v403
        %v2214 = vsel %vm1958, %v2086, %v414
        %v2215 = vsel %vm1959, %v2087, %v425
        %v2216 = vsel %vm1960, %v2088, %v436
        %v2217 = vsel %vm1961, %v2089, %v447
        %v2218 = vsel %vm1962, %v2090, %v458
        %v2219 = vsel %vm1963, %v2091, %v469
        %v2220 = vsel %vm1964, %v2092, %v480
        %v2221 = vsel %vm1965, %v2093, %v491
        %v2222 = vsel %vm1966, %v2094, %v502
        %v2223 = vsel %vm1967, %v2095, %v513
        %v2224 = vsel %vm1968, %v2096, %v524
        %v2225 = vsel %vm1969, %v2097, %v535
        %v2226 = vsel %vm1970, %v2098, %v546
        %v2227 = vsel %vm1971, %v2099, %v557
        %v2228 = vsel %vm1972, %v2100, %v568
        %v2229 = vsel %vm1973, %v2101, %v579
        %v2230 = vsel %vm1974, %v2102, %v590
        %v2231 = vsel %vm1975, %v2103, %v601
        %v2232 = vsel %vm1976, %v2104, %v612
        %v2233 = vsel %vm1977, %v2105, %v623
        %v2234 = vsel %vm1978, %v2106, %v634
        %v2235 = vsel %vm1979, %v2107, %v645
        %v2236 = vsel %vm1980, %v2108, %v656
        %v2237 = vsel %vm1981, %v2109, %v667
        %v2238 = vsel %vm1982, %v2110, %v678
        %v2239 = vsel %vm1983, %v2111, %v689
        %v2240 = vsel %vm1984, %v2112, %v700
        %v2241 = vsel %vm1985, %v2113, %v711
        %v2242 = vsel %vm1986, %v2114, %v722
        %v2243 = vsel %vm1987, %v2115, %v733
        %v2244 = vsel %vm1988, %v2116, %v744
        %v2245 = vsel %vm1989, %v2117, %v755
        %v2246 = vsel %vm1990, %v2118, %v766
        %v2247 = vsel %vm1991, %v2119, %v777
        %v2248 = vsel %vm1992, %v2120, %v788
        %v2249 = vsel %vm1993, %v2121, %v799
        %v2250 = vsel %vm1994, %v2122, %v810
        %v2251 = vsel %vm1995, %v2123, %v821
        %v2252 = vsel %vm1996, %v2124, %v832
        %v2253 = vsel %vm1997, %v2125, %v843
        %v2254 = vsel %vm1998, %v2126, %v854
        %v2255 = vsel %vm1999, %v2127, %v865
        %v2256 = vsel %vm2000, %v2128, %v876
        %v2257 = vsel %vm2001, %v2129, %v887
        %v2258 = vsel %vm2002, %v2130, %v898
        %v2259 = vsel %vm2003, %v2131, %v909
        %v2260 = vsel %vm2004, %v2132, %v920
        %v2261 = vsel %vm2005, %v2133, %v931
        %v2262 = vsel %vm2006, %v2134, %v942
        %v2263 = vsel %vm2007, %v2135, %v953
        %v2264 = vsel %vm2008, %v2136, %v964
        %v2265 = vsel %vm2009, %v2137, %v975
        %v2266 = vsel %vm2010, %v2138, %v986
        %v2267 = vsel %vm2011, %v2139, %v997
        %v2268 = vsel %vm2012, %v2140, %v1008
        %v2269 = vsel %vm2013, %v2141, %v1019
        %v2270 = vsel %vm2014, %v2142, %v1030
        %v2271 = vsel %vm2015, %v2143, %v1041
        %v2272 = vsel %vm2016, %v2144, %v1052
        %v2273 = vsel %vm2017, %v2145, %v1063
        %v2274 = vsel %vm2018, %v2146, %v1074
        %v2275 = vsel %vm2019, %v2147, %v1085
        %v2276 = vsel %vm2020, %v2148, %v1096
        %v2277 = vsel %vm2021, %v2149, %v1107
        %v2278 = vsel %vm2022, %v2150, %v1118
        %v2279 = vsel %vm2023, %v2151, %v1129
        %v2280 = vsel %vm2024, %v2152, %v1140
        %v2281 = vsel %vm2025, %v2153, %v1151
        %v2282 = vsel %vm2026, %v2154, %v1162
        %v2283 = vsel %vm2027, %v2155, %v1173
        %v2284 = vsel %vm2028, %v2156, %v1184
        %v2285 = vsel %vm2029, %v2157, %v1195
        %v2286 = vsel %vm2030, %v2158, %v1206
        %v2287 = vsel %vm2031, %v2159, %v1217
        %v2288 = vsel %vm2032, %v2160, %v1228
        %v2289 = vsel %vm2033, %v2161, %v1239
        %v2290 = vsel %vm2034, %v2162, %v1250
        %v2291 = vsel %vm2035, %v2163, %v1261
        %v2292 = vsel %vm2036, %v2164, %v1272
        %v2293 = vsel %vm2037, %v2165, %v1283
        %v2294 = vsel %vm2038, %v2166, %v1294
        %v2295 = vsel %vm2039, %v2167, %v1305
        %v2296 = vsel %vm2040, %v2168, %v1316
        %v2297 = vsel %vm2041, %v2169, %v1327
        %v2298 = vsel %vm2042, %v2170, %v1338
        %v2299 = vsel %vm2043, %v2171, %v1349
        %v2300 = vsel %vm2044, %v2172, %v1360
        %v2301 = vsel %vm2045, %v2173, %v1371
        %v2302 = vsel %vm2046, %v2174, %v1382
        %v2303 = vsel %vm2047, %v2175, %v1393
        %v2304 = vsel %vm2048, %v2176, %v1404
        %v2305 = vsel %vm2049, %v2177, %v1415
        %v2306 = vsel %vm2050, %v2178, %v1426
        %v2307 = vsel %vm2051, %v2179, %v1437
        %v2308 = vsel %vm2052, %v2180, %v1448
        %v2309 = vsel %vm2053, %v2181, %v1459
        %v2310 = vsel %vm2054, %v2182, %v1470
        %v2311 = vsel %vm2055, %v2183, %v1481
        %v2312 = vsel %vm2056, %v2184, %v1492
        %v2313 = vsel %vm2057, %v2185, %v1503
        %v2314 = vsel %vm2058, %v2186, %v1514
        %v2315 = vsel %vm2059, %v2187, %v1525
        %v2316 = vsel %vm2060, %v2188, %v1536
        %v2317 = vsel %vm2061, %v2189, %v1547
        %v2318 = vsel %vm2062, %v2190, %v1558
        %v2319 = vsel %vm2063, %v2191, %v1569
        %v2320 = vsel %vm2064, %v2192, %v1580
        %v2321 = vsel %vm2065, %v2193, %v1591
        %v2322 = vsel %vm2066, %v2194, %v1602
        %v2323 = vsel %vm2067, %v2195, %v1613
        %v2324 = vsel %vm2068, %v2196, %v1624
        %v2325 = vsel %vm2069, %v2197, %v1635
        %v2326 = vsel %vm2070, %v2198, %v1646
        %v2327 = vsel %vm2071, %v2199, %v1657
        %v2328 = vsel %vm2072, %v2200, %v1668
        %v2329 = vsel %vm2073, %v2201, %v1679
        %v2330 = vsel %vm2074, %v2202, %v1690
        %2331 = vst [vmem:[%s142] sm:$0xff] %v2203
        %2332 = vst [vmem:[%s142 + $0x8] sm:$0xff] %v2204
        %2333 = vst [vmem:[%s142 + $0x10] sm:$0xff] %v2205
        %2334 = vst [vmem:[%s142 + $0x18] sm:$0xff] %v2206
        %2335 = vst [vmem:[%s142 + $0x20] sm:$0xff] %v2207
        %2336 = vst [vmem:[%s142 + $0x28] sm:$0xff] %v2208
        %2337 = vst [vmem:[%s142 + $0x30] sm:$0xff] %v2209
        %2338 = vst [vmem:[%s142 + $0x38] sm:$0xff] %v2210
        %2339 = vst [vmem:[%s142 + $0x40] sm:$0xff] %v2211
        %2340 = vst [vmem:[%s142 + $0x48] sm:$0xff] %v2212
        %2341 = vst [vmem:[%s142 + $0x50] sm:$0xff] %v2213
        %2342 = vst [vmem:[%s142 + $0x58] sm:$0xff] %v2214
        %2343 = vst [vmem:[%s142 + $0x60] sm:$0xff] %v2215
        %2344 = vst [vmem:[%s142 + $0x68] sm:$0xff] %v2216
        %2345 = vst [vmem:[%s142 + $0x70] sm:$0xff] %v2217
        %2346 = vst [vmem:[%s142 + $0x78] sm:$0xff] %v2218
        %2347 = vst [vmem:[%s142 + $0x80] sm:$0xff] %v2219
        %2348 = vst [vmem:[%s142 + $0x88] sm:$0xff] %v2220
        %2349 = vst [vmem:[%s142 + $0x90] sm:$0xff] %v2221
        %2350 = vst [vmem:[%s142 + $0x98] sm:$0xff] %v2222
        %2351 = vst [vmem:[%s142 + $0xa0] sm:$0xff] %v2223
        %2352 = vst [vmem:[%s142 + $0xa8] sm:$0xff] %v2224
        %2353 = vst [vmem:[%s142 + $0xb0] sm:$0xff] %v2225
        %2354 = vst [vmem:[%s142 + $0xb8] sm:$0xff] %v2226
        %2355 = vst [vmem:[%s142 + $0xc0] sm:$0xff] %v2227
        %2356 = vst [vmem:[%s142 + $0xc8] sm:$0xff] %v2228
        %2357 = vst [vmem:[%s142 + $0xd0] sm:$0xff] %v2229
        %2358 = vst [vmem:[%s142 + $0xd8] sm:$0xff] %v2230
        %2359 = vst [vmem:[%s142 + $0xe0] sm:$0xff] %v2231
        %2360 = vst [vmem:[%s142 + $0xe8] sm:$0xff] %v2232
        %2361 = vst [vmem:[%s142 + $0xf0] sm:$0xff] %v2233
        %2362 = vst [vmem:[%s142 + $0xf8] sm:$0xff] %v2234
        %2363 = vst [vmem:[%s142 + $0x100] sm:$0xff] %v2235
        %2364 = vst [vmem:[%s142 + $0x108] sm:$0xff] %v2236
        %2365 = vst [vmem:[%s142 + $0x110] sm:$0xff] %v2237
        %2366 = vst [vmem:[%s142 + $0x118] sm:$0xff] %v2238
        %2367 = vst [vmem:[%s142 + $0x120] sm:$0xff] %v2239
        %2368 = vst [vmem:[%s142 + $0x128] sm:$0xff] %v2240
        %2369 = vst [vmem:[%s142 + $0x130] sm:$0xff] %v2241
        %2370 = vst [vmem:[%s142 + $0x138] sm:$0xff] %v2242
        %2371 = vst [vmem:[%s142 + $0x140] sm:$0xff] %v2243
        %2372 = vst [vmem:[%s142 + $0x148] sm:$0xff] %v2244
        %2373 = vst [vmem:[%s142 + $0x150] sm:$0xff] %v2245
        %2374 = vst [vmem:[%s142 + $0x158] sm:$0xff] %v2246
        %2375 = vst [vmem:[%s142 + $0x160] sm:$0xff] %v2247
        %2376 = vst [vmem:[%s142 + $0x168] sm:$0xff] %v2248
        %2377 = vst [vmem:[%s142 + $0x170] sm:$0xff] %v2249
        %2378 = vst [vmem:[%s142 + $0x178] sm:$0xff] %v2250
        %2379 = vst [vmem:[%s142 + $0x180] sm:$0xff] %v2251
        %2380 = vst [vmem:[%s142 + $0x188] sm:$0xff] %v2252
        %2381 = vst [vmem:[%s142 + $0x190] sm:$0xff] %v2253
        %2382 = vst [vmem:[%s142 + $0x198] sm:$0xff] %v2254
        %2383 = vst [vmem:[%s142 + $0x1a0] sm:$0xff] %v2255
        %2384 = vst [vmem:[%s142 + $0x1a8] sm:$0xff] %v2256
        %2385 = vst [vmem:[%s142 + $0x1b0] sm:$0xff] %v2257
        %2386 = vst [vmem:[%s142 + $0x1b8] sm:$0xff] %v2258
        %2387 = vst [vmem:[%s142 + $0x1c0] sm:$0xff] %v2259
        %2388 = vst [vmem:[%s142 + $0x1c8] sm:$0xff] %v2260
        %2389 = vst [vmem:[%s142 + $0x1d0] sm:$0xff] %v2261
        %2390 = vst [vmem:[%s142 + $0x1d8] sm:$0xff] %v2262
        %2391 = vst [vmem:[%s142 + $0x1e0] sm:$0xff] %v2263
        %2392 = vst [vmem:[%s142 + $0x1e8] sm:$0xff] %v2264
        %2393 = vst [vmem:[%s142 + $0x1f0] sm:$0xff] %v2265
        %2394 = vst [vmem:[%s142 + $0x1f8] sm:$0xff] %v2266
        %2395 = vst [vmem:[%s142 + $0x200] sm:$0xff] %v2267
        %2396 = vst [vmem:[%s142 + $0x208] sm:$0xff] %v2268
        %2397 = vst [vmem:[%s142 + $0x210] sm:$0xff] %v2269
        %2398 = vst [vmem:[%s142 + $0x218] sm:$0xff] %v2270
        %2399 = vst [vmem:[%s142 + $0x220] sm:$0xff] %v2271
        %2400 = vst [vmem:[%s142 + $0x228] sm:$0xff] %v2272
        %2401 = vst [vmem:[%s142 + $0x230] sm:$0xff] %v2273
        %2402 = vst [vmem:[%s142 + $0x238] sm:$0xff] %v2274
        %2403 = vst [vmem:[%s142 + $0x240] sm:$0xff] %v2275
        %2404 = vst [vmem:[%s142 + $0x248] sm:$0xff] %v2276
        %2405 = vst [vmem:[%s142 + $0x250] sm:$0xff] %v2277
        %2406 = vst [vmem:[%s142 + $0x258] sm:$0xff] %v2278
        %2407 = vst [vmem:[%s142 + $0x260] sm:$0xff] %v2279
        %2408 = vst [vmem:[%s142 + $0x268] sm:$0xff] %v2280
        %2409 = vst [vmem:[%s142 + $0x270] sm:$0xff] %v2281
        %2410 = vst [vmem:[%s142 + $0x278] sm:$0xff] %v2282
        %2411 = vst [vmem:[%s142 + $0x280] sm:$0xff] %v2283
        %2412 = vst [vmem:[%s142 + $0x288] sm:$0xff] %v2284
        %2413 = vst [vmem:[%s142 + $0x290] sm:$0xff] %v2285
        %2414 = vst [vmem:[%s142 + $0x298] sm:$0xff] %v2286
        %2415 = vst [vmem:[%s142 + $0x2a0] sm:$0xff] %v2287
        %2416 = vst [vmem:[%s142 + $0x2a8] sm:$0xff] %v2288
        %2417 = vst [vmem:[%s142 + $0x2b0] sm:$0xff] %v2289
        %2418 = vst [vmem:[%s142 + $0x2b8] sm:$0xff] %v2290
        %2419 = vst [vmem:[%s142 + $0x2c0] sm:$0xff] %v2291
        %2420 = vst [vmem:[%s142 + $0x2c8] sm:$0xff] %v2292
        %2421 = vst [vmem:[%s142 + $0x2d0] sm:$0xff] %v2293
        %2422 = vst [vmem:[%s142 + $0x2d8] sm:$0xff] %v2294
        %2423 = vst [vmem:[%s142 + $0x2e0] sm:$0xff] %v2295
        %2424 = vst [vmem:[%s142 + $0x2e8] sm:$0xff] %v2296
        %2425 = vst [vmem:[%s142 + $0x2f0] sm:$0xff] %v2297
        %2426 = vst [vmem:[%s142 + $0x2f8] sm:$0xff] %v2298
        %2427 = vst [vmem:[%s142 + $0x300] sm:$0xff] %v2299
        %2428 = vst [vmem:[%s142 + $0x308] sm:$0xff] %v2300
        %2429 = vst [vmem:[%s142 + $0x310] sm:$0xff] %v2301
        %2430 = vst [vmem:[%s142 + $0x318] sm:$0xff] %v2302
        %2431 = vst [vmem:[%s142 + $0x320] sm:$0xff] %v2303
        %2432 = vst [vmem:[%s142 + $0x328] sm:$0xff] %v2304
        %2433 = vst [vmem:[%s142 + $0x330] sm:$0xff] %v2305
        %2434 = vst [vmem:[%s142 + $0x338] sm:$0xff] %v2306
        %2435 = vst [vmem:[%s142 + $0x340] sm:$0xff] %v2307
        %2436 = vst [vmem:[%s142 + $0x348] sm:$0xff] %v2308
        %2437 = vst [vmem:[%s142 + $0x350] sm:$0xff] %v2309
        %2438 = vst [vmem:[%s142 + $0x358] sm:$0xff] %v2310
        %2439 = vst [vmem:[%s142 + $0x360] sm:$0xff] %v2311
        %2440 = vst [vmem:[%s142 + $0x368] sm:$0xff] %v2312
        %2441 = vst [vmem:[%s142 + $0x370] sm:$0xff] %v2313
        %2442 = vst [vmem:[%s142 + $0x378] sm:$0xff] %v2314
        %2443 = vst [vmem:[%s142 + $0x380] sm:$0xff] %v2315
        %2444 = vst [vmem:[%s142 + $0x388] sm:$0xff] %v2316
        %2445 = vst [vmem:[%s142 + $0x390] sm:$0xff] %v2317
        %2446 = vst [vmem:[%s142 + $0x398] sm:$0xff] %v2318
        %2447 = vst [vmem:[%s142 + $0x3a0] sm:$0xff] %v2319
        %2448 = vst [vmem:[%s142 + $0x3a8] sm:$0xff] %v2320
        %2449 = vst [vmem:[%s142 + $0x3b0] sm:$0xff] %v2321
        %2450 = vst [vmem:[%s142 + $0x3b8] sm:$0xff] %v2322
        %2451 = vst [vmem:[%s142 + $0x3c0] sm:$0xff] %v2323
        %2452 = vst [vmem:[%s142 + $0x3c8] sm:$0xff] %v2324
        %2453 = vst [vmem:[%s142 + $0x3d0] sm:$0xff] %v2325
        %2454 = vst [vmem:[%s142 + $0x3d8] sm:$0xff] %v2326
        %2455 = vst [vmem:[%s142 + $0x3e0] sm:$0xff] %v2327
        %2456 = vst [vmem:[%s142 + $0x3e8] sm:$0xff] %v2328
        %2457 = vst [vmem:[%s142 + $0x3f0] sm:$0xff] %v2329
        %2458 = vst [vmem:[%s142 + $0x3f8] sm:$0xff] %v2330
        %s2459 = sand.u32 %s52, 1
        %s2460 = scalar_lea.sflag [#allocation4], %s2459
        %s2461 = sand.u32 %s52, 1
        %s2462 = smul.addr %s2461, 1024
        %s2463 = scalar_lea.vmem [#allocation5], %s2462
        // Predicated region
        $region29: #{tpu_custom_call.1} parent=23 // pred_check
          %p2464 = pneg %p62
        $region30: #{tpu_custom_call.1} parent=23 // pred_check_branch
          %2466 = sbr.rel (%p2464) target = $region32
        $region31: #{tpu_custom_call.1} parent=23 // pred_region
          %s2467 = smul.u32 32, %s18
          %s2468 = ssub.s32 37, %s2467
          %p2469 = scmp.lt.s32.totalorder %s2468, 32
          %s2470 = scalar_select %p2469, %s2468, 32
          %s2471 = smul.u32 128, %s2470
          %s2472 = smul.u32 %s2471, 4
          %s2474 = ssub.s32 16384, %s2472
          %2475 = vsyncadd %s2460, %s2474
          %p2476 = scmp.ne.s32.totalorder 0, %s2472
          %s2477 = smul.addr %s2467, 4
          %s2478 = smul.addr %s2477, 128
          %s2479 = scalar_lea.hbm %s1, %s2478
          %s2480 = smul.u32 32, %s2470
          %s2481 = sshll.u32 %s2463, 4
          %s2482 = int_to_ptr.vmem [resolvable:$true] %s2481
          %s2483 = sshll.u32 %s2480, 4
          %2487 = dma.vmem_to_hbm [thread:$0]  (%p2476), %s2482, %s2483, %s2479, %s2460, 512, 512, 32
        $region32: #{tpu_custom_call.1} parent=23 // pred_fallthru
          _
      $region24: #{tpu_custom_call.1} parent=5 // pred_fallthru
        _
      %p2488 = scmp.le.s32.totalorder 2, %s13
      // Predicated region
      $region33: #{tpu_custom_call.1} parent=5 // pred_check
        %p2489 = pneg %p2488
      $region34: #{tpu_custom_call.1} parent=5 // pred_check_branch
        %2491 = sbr.rel (%p2489) target = $region36
      $region35: #{tpu_custom_call.1} parent=5 // pred_region
        %s2492 = ssub.s32 %s13, 2
        // Predicated region
        $region37: #{tpu_custom_call.1} parent=35 // pred_check
          %p2493 = pneg %p68
        $region38: #{tpu_custom_call.1} parent=35 // pred_check_branch
          %2495 = sbr.rel (%p2493) target = $region40
        $region39: #{tpu_custom_call.1} parent=35 // pred_region
          %s2496 = sand.u32 %s53, 1
          %s2497 = scalar_lea.sflag [#allocation4], %s2496
          %s2498 = sand.u32 %s53, 1
          %s2499 = smul.addr %s2498, 1024
          %s2500 = scalar_lea.vmem [#allocation5], %s2499
          %2501 = dma.done %s2497, 16384
        $region40: #{tpu_custom_call.1} parent=35 // pred_fallthru
          _
      $region36: #{tpu_custom_call.1} parent=5 // pred_fallthru
        _
    $region6: #{tpu_custom_call.1} parent=1 // loop_footer
      %s17 = sadd.s32 1, %s13
    $region7: #{tpu_custom_call.1} parent=1 // loop_footer_branch
      %12 = sbr.rel target = $region3
    $region8: #{tpu_custom_call.1} parent=1 // loop_exit
      _
    %2502 = vsyncpa [#allocation3], 1
    %s2503 = scalar_lea.sflag [#allocation3], 1
    %2504 = vsyncpa %s2503, 1
    %2505 = vsyncpa [#allocation4], 1
    %s2506 = scalar_lea.sflag [#allocation4], 1
    %2507 = vsyncpa %s2506, 1

</llo_original>
